<compile_context>
chip_gen: v7x
topology: tpu7x:2x2x1
jax: 0.10.0
libtpu: 0.0.40
codegen_flags: <defaults>
</compile_context>

<pallas_src>
import functools

import numpy as np
import jax
import jax.numpy as jnp
from jax.experimental import pallas as pl
from jax.experimental.pallas import tpu as pltpu

N_POOL_OUT = 626   # hard-coded in the PyTorch forward (pool_size arg is ignored)
_HALO = 3          # conv1 (k3, p1) needs +-1; conv2 (k3, d2, p2) needs +-2 more


def _round_up(x, m):
    return (x + m - 1) // m * m


def _vmem_cap_bytes():
    try:
        return int(pltpu.get_tpu_info().vmem_capacity_bytes)
    except Exception:
        return 64 << 20                      # v7x-safe fallback


def _pick_tile_rows(L):
    cap = _vmem_cap_bytes()
    target = 2048 if cap >= (96 << 20) else 1024   # bigger tiles on v5e/v6e
    return int(max(8, min(target, _round_up(L, 8))))


def _vmem_limit(block_shapes, scratch_shapes=(), extra_bytes=0):
    """Scoped-VMEM limit from actual residency (double-buffered blocks +
    scratch + in-kernel temporaries), capped at 3/4 of physical VMEM."""
    cap = _vmem_cap_bytes()
    est = sum(2 * int(np.prod(s)) * 4 for s in block_shapes)
    est += sum(int(np.prod(s)) * 4 for s in scratch_shapes)
    est += int(extra_bytes)
    est = 2 * est + (4 << 20)                # compiler-internal headroom
    return int(min(max(est, 16 << 20), (cap * 3) // 4))


# ----------------- stage 1: conv1 (k3, p1) -> BN1 partial sums -----------------
def _conv1_sums_kernel(L, TL, x_ref, w1_ref, sums_ref):
    t = pl.program_id(1)
    xw = x_ref[0]                                            # (TL + 6, C_in)
    # conv1 output for this tile's rows: 3 accumulating MXU dots (no im2col).
    h = jnp.dot(xw[2:2 + TL], w1_ref[0], preferred_element_type=jnp.float32)
    h += jnp.dot(xw[3:3 + TL], w1_ref[1], preferred_element_type=jnp.float32)
    h += jnp.dot(xw[4:4 + TL], w1_ref[2], preferred_element_type=jnp.float32)
    # drop rows beyond the true sequence length from the BN statistics
    row = jax.lax.broadcasted_iota(jnp.int32, (TL, 1), 0) + t * TL
    hm = jnp.where(row < L, h, 0.0)
    s = jnp.sum(hm, axis=0, keepdims=True)
    ss = jnp.sum(hm * hm, axis=0, keepdims=True)
    sums_ref[...] = jnp.concatenate([s, ss], axis=0)[None]


# ----- stage 2: conv1 (recomputed) -> BN1+ReLU -> conv2 (k3,d2,p2) -> sums -----
def _conv2_kernel(L, TL, x_ref, w1_ref, w2_ref, s1_ref, t1_ref, y_ref, sums_ref):
    t = pl.program_id(1)
    base = t * TL
    xw = x_ref[0]                                            # (TL + 6, C_in)
    E = TL + 4                                               # conv1 on [-2, TL+2)
    h = jnp.dot(xw[0:E], w1_ref[0], preferred_element_type=jnp.float32)
    h += jnp.dot(xw[1:1 + E], w1_ref[1], preferred_element_type=jnp.float32)
    h += jnp.dot(xw[2:2 + E], w1_ref[2], preferred_element_type=jnp.float32)
    # BN1 scale/shift + ReLU.  Positions outside [0, L) are forced to zero so
    # that conv2's zero padding sees zeros (not relu(shift)).
    ge = jax.lax.broadcasted_iota(jnp.int32, (E, 1), 0) + (base - 2)
    a = jnp.where((ge >= 0) & (ge < L),
                  jnp.maximum(h * s1_ref[...] + t1_ref[...], 0.0), 0.0)
    # conv2: kernel 3, dilation 2 -> taps at offsets 0, 2, 4 of the extended tile
    y = jnp.dot(a[0:TL], w2_ref[0], preferred_element_type=jnp.float32)
    y += jnp.dot(a[2:2 + TL], w2_ref[1], preferred_element_type=jnp.float32)
    y += jnp.dot(a[4:4 + TL], w2_ref[2], preferred_element_type=jnp.float32)
    y_ref[...] = y[None]
    row = jax.lax.broadcasted_iota(jnp.int32, (TL, 1), 0) + base
    ym = jnp.where(row < L, y, 0.0)
    s = jnp.sum(ym, axis=0, keepdims=True)
    ss = jnp.sum(ym * ym, axis=0, keepdims=True)
    sums_ref[...] = jnp.concatenate([s, ss], axis=0)[None]


# --- stage 3: BN2+ReLU -> adaptive max pool (626 bins, accumulated over tiles) ---
def _pool_kernel(L, TL, C, WPAD,
                 y_ref, s2_ref, t2_ref, starts_ref, ends_ref, blo_ref, nb_ref,
                 out_ref, zpad_ref):
    t = pl.program_id(1)

    @pl.when(t == 0)
    def _():
        out_ref[...] = jnp.zeros_like(out_ref)       # post-ReLU maxima are >= 0

    z = jnp.maximum(y_ref[0] * s2_ref[...] + t2_ref[...], 0.0)     # (TL, C)
    zpad_ref[0:TL, :] = z
    zpad_ref[TL:TL + WPAD, :] = jnp.zeros((WPAD, C), jnp.float32)

    base = t * TL
    koff = jax.lax.broadcasted_iota(jnp.int32, (WPAD, 1), 0)
    b0 = blo_ref[t]                                  # first bin touching this tile

    def bin_body(j, carry):
        i = b0 + j
        ls = jnp.maximum(starts_ref[i] - base, 0)
        le = jnp.minimum(ends_ref[i] - base, TL)
        win = zpad_ref[pl.ds(ls, WPAD), :]                           # (WPAD, C)
        part = jnp.max(jnp.where(koff + ls < le, win, 0.0),
                       axis=0, keepdims=True)                        # (1, C)
        cur = out_ref[:, pl.ds(i, 1), :]
        out_ref[:, pl.ds(i, 1), :] = jnp.maximum(cur, part[None])
        return carry

    jax.lax.fori_loop(0, nb_ref[t], bin_body, 0)


# ------------------------------ host-side helpers ------------------------------
def _bn_scale_shift(sums, count, gamma, beta, eps):
    """Per-batch BN (biased var) folded into a per-channel scale/shift, O(C)."""
    tot = jnp.sum(sums, axis=0)                              # (2, C)
    mean = tot[0] / count
    var = jnp.maximum(tot[1] / count - mean * mean, 0.0)
    scale = gamma * jax.lax.rsqrt(var + eps)
    shift = beta - mean * scale
    return scale[None, :], shift[None, :]                    # (1, C) each


def _pool_geometry(L, TL, n_lt):
    """Static adaptive-pool geometry (same bin rule as F.adaptive_max_pool1d)
    plus, per L-tile, the contiguous range of bins overlapping that tile."""
    np_pad = _round_up(N_POOL_OUT, 8)
    idx = np.arange(N_POOL_OUT, dtype=np.int64)
    starts = (idx * L) // N_POOL_OUT
    ends = -((-(idx + 1) * L) // N_POOL_OUT)                 # ceil((i+1)*L/N)
    wmax = int((ends - starts).max())
    wpad = _round_up(min(wmax, TL), 8)
    blo = np.zeros((n_lt,), np.int32)
    nb = np.zeros((n_lt,), np.int32)
    for t in range(n_lt):
        lo, hi = t * TL, (t + 1) * TL
        ov = np.nonzero((starts < hi) & (ends > lo))[0]
        blo[t] = int(ov[0]) if ov.size else 0
        nb[t] = int(ov.size)
    sp = np.zeros((np_pad,), np.int32); sp[:N_POOL_OUT] = starts
    ep = np.zeros((np_pad,), np.int32); ep[:N_POOL_OUT] = ends
    return np_pad, wpad, sp, ep, blo, nb


# ---------------------------------- wrapper ----------------------------------
@functools.partial(jax.jit, static_argnames=("pool_size", "eps", "tile_rows"))
def conv_pre_wav_block(x_ncl, w1_torch, w2_torch, gamma1, beta1, gamma2, beta2,
                       pool_size=None, eps=1e-5, tile_rows=None):
    """x_ncl: (B, C_in, L) float32 -> (B, C_out, 626), like the PyTorch module.
    `pool_size` is accepted but ignored, matching the original forward()."""
    del pool_size
    B, C_in, L = x_ncl.shape
    C_out = w1_torch.shape[0]
    H = _HALO

    TL = int(tile_rows) if tile_rows is not None else _pick_tile_rows(L)
    n_lt = -(-L // TL)
    Lp = n_lt * TL
    BT = B * n_lt
    TLH = TL + 2 * H

    # NCL -> NLC (channels on lanes) and halo'd, overlapping L-tiles of x.
    # The duplicated halo rows are only 2*H per tile of the (tiny, C_in-wide) x.
    x_nlc = jnp.transpose(x_ncl, (0, 2, 1)).astype(jnp.float32)      # (B, L, C_in)
    x_pad = jnp.pad(x_nlc, ((0, 0), (H, H + Lp - L), (0, 0)))        # (B, Lp+2H, C_in)
    widx = jnp.asarray(np.arange(n_lt, dtype=np.int32)[:, None] * TL
                       + np.arange(TLH, dtype=np.int32)[None, :])
    x_win = jnp.take(x_pad, widx, axis=1).reshape(BT, TLH, C_in)

    # conv taps: torch (C_out, C, 3) -> (3, C, C_out): one (C, C_out) weight per
    # tap.  No 128-lane padding of channels; the MXU pads lanes internally.
    w1 = jnp.transpose(w1_torch.astype(jnp.float32), (2, 1, 0))      # (3, C_in, C_out)
    w2 = jnp.transpose(w2_torch.astype(jnp.float32), (2, 1, 0))      # (3, C_out, C_out)

    g1 = gamma1.astype(jnp.float32); b1 = beta1.astype(jnp.float32)
    g2 = gamma2.astype(jnp.float32); b2 = beta2.astype(jnp.float32)

    par2 = ("parallel", "parallel")

    # ---- stage 1: conv1 -> BN1 partial sums (conv1 activation never hits HBM) ----
    sums1 = pl.pallas_call(
        functools.partial(_conv1_sums_kernel, L, TL),
        grid=(B, n_lt),
        out_shape=jax.ShapeDtypeStruct((BT, 2, C_out), jnp.float32),
        in_specs=[pl.BlockSpec((1, TLH, C_in), lambda b, t: (b * n_lt + t, 0, 0)),
                  pl.BlockSpec((3, C_in, C_out), lambda b, t: (0, 0, 0))],
        out_specs=pl.BlockSpec((1, 2, C_out), lambda b, t: (b * n_lt + t, 0, 0)),
        compiler_params=pltpu.CompilerParams(
            dimension_semantics=par2,
            vmem_limit_bytes=_vmem_limit(
                [(TLH, C_in), (3, C_in, C_out), (2, C_out)],
                extra_bytes=4 * TL * C_out * 4)),
    )(x_win, w1)

    s1, t1 = _bn_scale_shift(sums1, B * L, g1, b1, eps)

    # ---- stage 2: recompute conv1 -> BN1+ReLU -> dilated conv2 -> y + BN2 sums ----
    y, sums2 = pl.pallas_call(
        functools.partial(_conv2_kernel, L, TL),
        grid=(B, n_lt),
        out_shape=(jax.ShapeDtypeStruct((B, Lp, C_out), jnp.float32),
                   jax.ShapeDtypeStruct((BT, 2, C_out), jnp.float32)),
        in_specs=[pl.BlockSpec((1, TLH, C_in), lambda b, t: (b * n_lt + t, 0, 0)),
                  pl.BlockSpec((3, C_in, C_out), lambda b, t: (0, 0, 0)),
                  pl.BlockSpec((3, C_out, C_out), lambda b, t: (0, 0, 0)),
                  pl.BlockSpec((1, C_out), lambda b, t: (0, 0)),
                  pl.BlockSpec((1, C_out), lambda b, t: (0, 0))],
        out_specs=(pl.BlockSpec((1, TL, C_out), lambda b, t: (b, t, 0)),
                   pl.BlockSpec((1, 2, C_out), lambda b, t: (b * n_lt + t, 0, 0))),
        compiler_params=pltpu.CompilerParams(
            dimension_semantics=par2,
            vmem_limit_bytes=_vmem_limit(
                [(TLH, C_in), (3, C_in, C_out), (3, C_out, C_out),
                 (1, C_out), (1, C_out), (TL, C_out), (2, C_out)],
                extra_bytes=8 * TL * C_out * 4)),
    )(x_win, w1, w2, s1, t1)

    s2, t2 = _bn_scale_shift(sums2, B * L, g2, b2, eps)

    # ---- stage 3: BN2+ReLU -> adaptive max pool, accumulated over L-tiles ----
    Np, WPAD, starts_np, ends_np, blo_np, nb_np = _pool_geometry(L, TL, n_lt)
    starts = jnp.asarray(starts_np)
    ends = jnp.asarray(ends_np)
    blo = jnp.asarray(blo_np)
    nb = jnp.asarray(nb_np)

    smem = pl.BlockSpec(memory_space=pltpu.MemorySpace.SMEM)
    pooled = pl.pallas_call(
        functools.partial(_pool_kernel, L, TL, C_out, WPAD),
        grid=(B, n_lt),
        out_shape=jax.ShapeDtypeStruct((B, Np, C_out), jnp.float32),
        in_specs=[pl.BlockSpec((1, TL, C_out), lambda b, t: (b, t, 0)),
                  pl.BlockSpec((1, C_out), lambda b, t: (0, 0)),
                  pl.BlockSpec((1, C_out), lambda b, t: (0, 0)),
                  smem, smem, smem, smem],
        out_specs=pl.BlockSpec((1, Np, C_out), lambda b, t: (b, 0, 0)),
        scratch_shapes=[pltpu.VMEM((TL + WPAD, C_out), jnp.float32)],
        compiler_params=pltpu.CompilerParams(
            dimension_semantics=("parallel", "arbitrary"),
            vmem_limit_bytes=_vmem_limit(
                [(TL, C_out), (1, C_out), (1, C_out), (Np, C_out)],
                scratch_shapes=[(TL + WPAD, C_out)],
                extra_bytes=3 * TL * C_out * 4)),
    )(y, s2, t2, starts, ends, blo, nb)

    out = pooled[:, :N_POOL_OUT, :]                       # drop padded bins
    return jnp.transpose(out, (0, 2, 1))                  # (B, C_out, 626)


# --------------------------------- reference ----------------------------------
def reference(x_ncl, w1_torch, w2_torch, eps=1e-5):
    """Pure-JAX reference of the PyTorch forward (training-mode BN, gamma=1, beta=0)."""
    def bn_relu(z):  # z: (B, C, L)
        m = jnp.mean(z, axis=(0, 2), keepdims=True)
        v = jnp.mean((z - m) ** 2, axis=(0, 2), keepdims=True)
        return jnp.maximum((z - m) * jax.lax.rsqrt(v + eps), 0.0)

    h = jax.lax.conv_general_dilated(x_ncl, w1_torch, (1,), [(1, 1)],
                                     dimension_numbers=('NCH', 'OIH', 'NCH'))
    h = bn_relu(h)
    y = jax.lax.conv_general_dilated(h, w2_torch, (1,), [(2, 2)], rhs_dilation=(2,),
                                     dimension_numbers=('NCH', 'OIH', 'NCH'))
    y = bn_relu(y)
    L = y.shape[-1]
    outs = []
    for i in range(N_POOL_OUT):
        s = (i * L) // N_POOL_OUT
        e = -((-(i + 1) * L) // N_POOL_OUT)
        outs.append(jnp.max(y[:, :, s:e], axis=-1))
    return jnp.stack(outs, axis=-1)


if __name__ == "__main__":
    key = jax.random.PRNGKey(0)
    B, C_in, C_out = 2, 4, 8
    k_x, k_w1, k_w2, k_x2 = jax.random.split(key, 4)

    # Deterministic xavier_uniform-style init (like init_layer), bias-free convs,
    # BN gamma=1 / beta=0 (like init_bn).
    bound1 = float(np.sqrt(6.0 / (C_in * 3 + C_out * 3)))
    w1_t = jax.random.uniform(k_w1, (C_out, C_in, 3), jnp.float32, -bound1, bound1)
    bound2 = float(np.sqrt(6.0 / (C_out * 3 + C_out * 3)))
    w2_t = jax.random.uniform(k_w2, (C_out, C_out, 3), jnp.float32, -bound2, bound2)
    gamma1 = jnp.ones((C_out,), jnp.float32); beta1 = jnp.zeros((C_out,), jnp.float32)
    gamma2 = jnp.ones((C_out,), jnp.float32); beta2 = jnp.zeros((C_out,), jnp.float32)

    # test 1: tiny sequence (single L-tile)
    L = 16
    x = jax.random.normal(k_x, (B, C_in, L), jnp.float32)
    out = conv_pre_wav_block(x, w1_t, w2_t, gamma1, beta1, gamma2, beta2, pool_size=4)
    out = jax.block_until_ready(out)
    assert out.shape == (B, C_out, N_POOL_OUT), out.shape
    ref = jax.block_until_ready(reference(x, w1_t, w2_t))
    np.testing.assert_allclose(np.asarray(out), np.asarray(ref), rtol=1e-4, atol=1e-4)

    # test 2: multi-tile path (halos across tiles, padded tail rows in the last
    # tile, pool bins straddling tile boundaries)
    L2 = 700
    x2 = jax.random.normal(k_x2, (B, C_in, L2), jnp.float32)
    out2 = conv_pre_wav_block(x2, w1_t, w2_t, gamma1, beta1, gamma2, beta2,
                              pool_size=4, tile_rows=16)
    out2 = jax.block_until_ready(out2)
    ref2 = jax.block_until_ready(reference(x2, w1_t, w2_t))
    np.testing.assert_allclose(np.asarray(out2), np.asarray(ref2), rtol=1e-4, atol=1e-4)

    print("KERNEL_OK")
</pallas_src>

<mosaic_0001>
module attributes {stable_mosaic.version = 11 : i64} {
  func.func @_pool_kernel(%arg0: i32, %arg1: i32, %arg2: memref<1x16x8xf32, #tpu.memory_space<vmem>>, %arg3: memref<1x8xf32, #tpu.memory_space<vmem>>, %arg4: memref<1x8xf32, #tpu.memory_space<vmem>>, %arg5: memref<632xi32, #tpu.memory_space<smem>>, %arg6: memref<632xi32, #tpu.memory_space<smem>>, %arg7: memref<1xi32, #tpu.memory_space<smem>>, %arg8: memref<1xi32, #tpu.memory_space<smem>>, %arg9: memref<1x632x8xf32, #tpu.memory_space<vmem>>, %arg10: memref<24x8xf32, #tpu.memory_space<vmem>>) attributes {dimension_semantics = [#tpu.dimension_semantics<parallel>, #tpu.dimension_semantics<arbitrary>], iteration_bounds = array<i64: 2, 1>, scalar_prefetch = 0 : i64, scratch_operands = 1 : i64, tpu.core_type = #tpu.core_type<tc>, window_params = [{transform_indices = @transform_0, window_bounds = array<i64: 1, 16, 8>}, {pipeline_mode = #tpu.pipeline_mode<synchronous>, transform_indices = @transform_1, window_bounds = array<i64: 1, 8>}, {pipeline_mode = #tpu.pipeline_mode<synchronous>, transform_indices = @transform_2, window_bounds = array<i64: 1, 8>}, {transform_indices = @transform_3, window_bounds = array<i64: 632>}, {transform_indices = @transform_4, window_bounds = array<i64: 632>}, {transform_indices = @transform_5, window_bounds = array<i64: 1>}, {transform_indices = @transform_6, window_bounds = array<i64: 1>}, {transform_indices = @transform_7, window_bounds = array<i64: 1, 632, 8>}]} {
    %c0_i32 = arith.constant 0 : i32
    %0 = arith.cmpi eq, %arg1, %c0_i32 : i32
    %1 = arith.extui %0 : i1 to i32
    %c0_i32_0 = arith.constant 0 : i32
    %2 = arith.cmpi ne, %1, %c0_i32_0 : i32
    scf.if %2 {
      %cst_13 = arith.constant 0.000000e+00 : f32
      %24 = vector.broadcast %cst_13 : f32 to vector<1x632x8xf32>
      %c0_14 = arith.constant 0 : index
      %c0_15 = arith.constant 0 : index
      %c0_16 = arith.constant 0 : index
      %25 = vector.load %arg9[%c0_14, %c0_15, %c0_16] : memref<1x632x8xf32, #tpu.memory_space<vmem>>, vector<1x632x8xf32>
      tpu.vector_store %arg9[%c0_14, %c0_15, %c0_16], %24 {strides = array<i32>} : memref<1x632x8xf32, #tpu.memory_space<vmem>>, vector<1x632x8xf32>,
    } else {
    }
    %c0 = arith.constant 0 : index
    %c0_1 = arith.constant 0 : index
    %c0_2 = arith.constant 0 : index
    %3 = vector.load %arg2[%c0, %c0_1, %c0_2] : memref<1x16x8xf32, #tpu.memory_space<vmem>>, vector<1x16x8xf32>
    %4 = vector.shape_cast %3 : vector<1x16x8xf32> to vector<16x8xf32>
    %c0_3 = arith.constant 0 : index
    %c0_4 = arith.constant 0 : index
    %5 = vector.load %arg3[%c0_3, %c0_4] : memref<1x8xf32, #tpu.memory_space<vmem>>, vector<1x8xf32>
    %6 = vector.broadcast %5 : vector<1x8xf32> to vector<16x8xf32>
    %7 = arith.mulf %4, %6 : vector<16x8xf32>
    %c0_5 = arith.constant 0 : index
    %c0_6 = arith.constant 0 : index
    %8 = vector.load %arg4[%c0_5, %c0_6] : memref<1x8xf32, #tpu.memory_space<vmem>>, vector<1x8xf32>
    %9 = vector.broadcast %8 : vector<1x8xf32> to vector<16x8xf32>
    %10 = arith.addf %7, %9 : vector<16x8xf32>
    %cst = arith.constant 0.000000e+00 : f32
    %11 = vector.broadcast %cst : f32 to vector<16x8xf32>
    %12 = arith.maximumf %10, %11 : vector<16x8xf32>
    %c0_7 = arith.constant 0 : index
    %c0_8 = arith.constant 0 : index
    %13 = vector.load %arg10[%c0_7, %c0_8] : memref<24x8xf32, #tpu.memory_space<vmem>>, vector<16x8xf32>
    tpu.vector_store %arg10[%c0_7, %c0_8], %12 {strides = array<i32>} : memref<24x8xf32, #tpu.memory_space<vmem>>, vector<16x8xf32>,
    %cst_9 = arith.constant 0.000000e+00 : f32
    %14 = vector.broadcast %cst_9 : f32 to vector<8x8xf32>
    %c16 = arith.constant 16 : index
    %c0_10 = arith.constant 0 : index
    %15 = vector.load %arg10[%c16, %c0_10] : memref<24x8xf32, #tpu.memory_space<vmem>>, vector<8x8xf32>
    tpu.vector_store %arg10[%c16, %c0_10], %14 {strides = array<i32>} : memref<24x8xf32, #tpu.memory_space<vmem>>, vector<8x8xf32>,
    %c16_i32 = arith.constant 16 : i32
    %16 = arith.muli %arg1, %c16_i32 : i32
    %17 = tpu.iota {dimensions = array<i32: 0>} : vector<8x1xi32>
    %18 = arith.index_cast %arg1 : i32 to index
    %19 = memref.load %arg7[%18] : memref<1xi32, #tpu.memory_space<smem>>
    %20 = arith.index_cast %arg1 : i32 to index
    %21 = memref.load %arg8[%20] : memref<1xi32, #tpu.memory_space<smem>>
    %c0_i32_11 = arith.constant 0 : i32
    %c0_i32_12 = arith.constant 0 : i32
    %22 = arith.subi %21, %c0_i32_12 : i32
    %23 = arith.addi %c0_i32_12, %22 : i32
    %c1_i32 = arith.constant 1 : i32
    scf.for %arg11 = %c0_i32_12 to %23 step %c1_i32  : i32 {
      %24 = arith.addi %19, %arg11 : i32
      %25 = arith.index_cast %24 : i32 to index
      %26 = memref.load %arg5[%25] : memref<632xi32, #tpu.memory_space<smem>>
      %27 = arith.subi %26, %16 : i32
      %c0_i32_13 = arith.constant 0 : i32
      %28 = arith.maxsi %27, %c0_i32_13 : i32
      %29 = arith.index_cast %24 : i32 to index
      %30 = memref.load %arg6[%29] : memref<632xi32, #tpu.memory_space<smem>>
      %31 = arith.subi %30, %16 : i32
      %c16_i32_14 = arith.constant 16 : i32
      %32 = arith.minsi %31, %c16_i32_14 : i32
      %33 = arith.index_cast %28 : i32 to index
      %c0_15 = arith.constant 0 : index
      %34 = vector.load %arg10[%33, %c0_15] : memref<24x8xf32, #tpu.memory_space<vmem>>, vector<8x8xf32>
      %35 = vector.broadcast %28 : i32 to vector<8x1xi32>
      %36 = arith.addi %17, %35 : vector<8x1xi32>
      %37 = vector.broadcast %32 : i32 to vector<8x1xi32>
      %38 = arith.cmpi slt, %36, %37 : vector<8x1xi32>
      %cst_16 = arith.constant 0.000000e+00 : f32
      %39 = vector.shape_cast %38 : vector<8x1xi1> to vector<8x1xi1>
      %40 = vector.broadcast %39 : vector<8x1xi1> to vector<8x8xi1>
      %41 = vector.broadcast %cst_16 : f32 to vector<8x8xf32>
      %42 = arith.select %40, %34, %41 : vector<8x8xi1>, vector<8x8xf32>
      %cst_17 = arith.constant dense<0xFF800000> : vector<8xf32>
      %43 = vector.multi_reduction <maximumf>, %42, %cst_17 [0] : vector<8x8xf32> to vector<8xf32>
      %44 = vector.shape_cast %43 : vector<8xf32> to vector<1x8xf32>
      %c0_18 = arith.constant 0 : index
      %45 = arith.index_cast %24 : i32 to index
      %c0_19 = arith.constant 0 : index
      %46 = vector.load %arg9[%c0_18, %45, %c0_19] : memref<1x632x8xf32, #tpu.memory_space<vmem>>, vector<1x1x8xf32>
      %47 = vector.shape_cast %44 : vector<1x8xf32> to vector<1x1x8xf32>
      %48 = arith.maximumf %46, %47 : vector<1x1x8xf32>
      %c0_20 = arith.constant 0 : index
      %49 = arith.index_cast %24 : i32 to index
      %c0_21 = arith.constant 0 : index
      %50 = vector.load %arg9[%c0_20, %49, %c0_21] : memref<1x632x8xf32, #tpu.memory_space<vmem>>, vector<1x1x8xf32>
      tpu.vector_store %arg9[%c0_20, %49, %c0_21], %48 {strides = array<i32>} : memref<1x632x8xf32, #tpu.memory_space<vmem>>, vector<1x1x8xf32>,
    }
    return
  }
  func.func @transform_0(%arg0: i32, %arg1: i32) -> (i32, i32, i32) {
    %c0_i32 = arith.constant 0 : i32
    %c0_i32_0 = arith.constant 0 : i32
    return %arg0, %arg1, %c0_i32 : i32, i32, i32
  }
  func.func @transform_1(%arg0: i32, %arg1: i32) -> (i32, i32) {
    %c0_i32 = arith.constant 0 : i32
    %c0_i32_0 = arith.constant 0 : i32
    %c0_i32_1 = arith.constant 0 : i32
    return %c0_i32, %c0_i32_0 : i32, i32
  }
  func.func @transform_2(%arg0: i32, %arg1: i32) -> (i32, i32) {
    %c0_i32 = arith.constant 0 : i32
    %c0_i32_0 = arith.constant 0 : i32
    %c0_i32_1 = arith.constant 0 : i32
    return %c0_i32, %c0_i32_0 : i32, i32
  }
  func.func @transform_3(%arg0: i32, %arg1: i32) -> i32 {
    %c0_i32 = arith.constant 0 : i32
    %c0_i32_0 = arith.constant 0 : i32
    return %c0_i32 : i32
  }
  func.func @transform_4(%arg0: i32, %arg1: i32) -> i32 {
    %c0_i32 = arith.constant 0 : i32
    %c0_i32_0 = arith.constant 0 : i32
    return %c0_i32 : i32
  }
  func.func @transform_5(%arg0: i32, %arg1: i32) -> i32 {
    %c0_i32 = arith.constant 0 : i32
    %c0_i32_0 = arith.constant 0 : i32
    return %c0_i32 : i32
  }
  func.func @transform_6(%arg0: i32, %arg1: i32) -> i32 {
    %c0_i32 = arith.constant 0 : i32
    %c0_i32_0 = arith.constant 0 : i32
    return %c0_i32 : i32
  }
  func.func @transform_7(%arg0: i32, %arg1: i32) -> (i32, i32, i32) {
    %c0_i32 = arith.constant 0 : i32
    %c0_i32_0 = arith.constant 0 : i32
    %c0_i32_1 = arith.constant 0 : i32
    return %arg0, %c0_i32, %c0_i32_0 : i32, i32, i32
  }
}

module attributes {stable_mosaic.version = 11 : i64} {
  func.func @_conv1_sums_kernel(%arg0: i32, %arg1: i32, %arg2: memref<1x22x4xf32, #tpu.memory_space<vmem>>, %arg3: memref<3x4x8xf32, #tpu.memory_space<vmem>>, %arg4: memref<1x2x8xf32, #tpu.memory_space<vmem>>) attributes {dimension_semantics = [#tpu.dimension_semantics<parallel>, #tpu.dimension_semantics<parallel>], iteration_bounds = array<i64: 2, 1>, scalar_prefetch = 0 : i64, scratch_operands = 0 : i64, tpu.core_type = #tpu.core_type<tc>, window_params = [{transform_indices = @transform_0, window_bounds = array<i64: 1, 22, 4>}, {pipeline_mode = #tpu.pipeline_mode<synchronous>, transform_indices = @transform_1, window_bounds = array<i64: 3, 4, 8>}, {transform_indices = @transform_2, window_bounds = array<i64: 1, 2, 8>}]} {
    %c0 = arith.constant 0 : index
    %c0_0 = arith.constant 0 : index
    %c0_1 = arith.constant 0 : index
    %0 = vector.load %arg2[%c0, %c0_0, %c0_1] : memref<1x22x4xf32, #tpu.memory_space<vmem>>, vector<1x22x4xf32>
    %1 = vector.shape_cast %0 : vector<1x22x4xf32> to vector<22x4xf32>
    %2 = vector.extract_strided_slice %1 {offsets = [2, 0], sizes = [16, 4], strides = [1, 1]} : vector<22x4xf32> to vector<16x4xf32>
    %c0_2 = arith.constant 0 : index
    %c0_3 = arith.constant 0 : index
    %c0_4 = arith.constant 0 : index
    %3 = vector.load %arg3[%c0_2, %c0_3, %c0_4] : memref<3x4x8xf32, #tpu.memory_space<vmem>>, vector<1x4x8xf32>
    %4 = vector.shape_cast %3 : vector<1x4x8xf32> to vector<4x8xf32>
    %cst = arith.constant dense<0.000000e+00> : vector<16x8xf32>
    %5 = tpu.matmul %2, %4, %cst {dimension_numbers = #tpu.dot_dimension_numbers<[1], [0], [0], [1], [0, 0, 1, 1], [], []>} : vector<16x4xf32>, vector<4x8xf32>, vector<16x8xf32> -> vector<16x8xf32>
    %6 = vector.extract_strided_slice %1 {offsets = [3, 0], sizes = [16, 4], strides = [1, 1]} : vector<22x4xf32> to vector<16x4xf32>
    %c1 = arith.constant 1 : index
    %c0_5 = arith.constant 0 : index
    %c0_6 = arith.constant 0 : index
    %7 = vector.load %arg3[%c1, %c0_5, %c0_6] : memref<3x4x8xf32, #tpu.memory_space<vmem>>, vector<1x4x8xf32>
    %8 = vector.shape_cast %7 : vector<1x4x8xf32> to vector<4x8xf32>
    %cst_7 = arith.constant dense<0.000000e+00> : vector<16x8xf32>
    %9 = tpu.matmul %6, %8, %cst_7 {dimension_numbers = #tpu.dot_dimension_numbers<[1], [0], [0], [1], [0, 0, 1, 1], [], []>} : vector<16x4xf32>, vector<4x8xf32>, vector<16x8xf32> -> vector<16x8xf32>
    %10 = arith.addf %5, %9 : vector<16x8xf32>
    %11 = vector.extract_strided_slice %1 {offsets = [4, 0], sizes = [16, 4], strides = [1, 1]} : vector<22x4xf32> to vector<16x4xf32>
    %c2 = arith.constant 2 : index
    %c0_8 = arith.constant 0 : index
    %c0_9 = arith.constant 0 : index
    %12 = vector.load %arg3[%c2, %c0_8, %c0_9] : memref<3x4x8xf32, #tpu.memory_space<vmem>>, vector<1x4x8xf32>
    %13 = vector.shape_cast %12 : vector<1x4x8xf32> to vector<4x8xf32>
    %cst_10 = arith.constant dense<0.000000e+00> : vector<16x8xf32>
    %14 = tpu.matmul %11, %13, %cst_10 {dimension_numbers = #tpu.dot_dimension_numbers<[1], [0], [0], [1], [0, 0, 1, 1], [], []>} : vector<16x4xf32>, vector<4x8xf32>, vector<16x8xf32> -> vector<16x8xf32>
    %15 = arith.addf %10, %14 : vector<16x8xf32>
    %16 = tpu.iota {dimensions = array<i32: 0>} : vector<16x1xi32>
    %c16_i32 = arith.constant 16 : i32
    %17 = arith.muli %arg1, %c16_i32 : i32
    %18 = vector.broadcast %17 : i32 to vector<16x1xi32>
    %19 = arith.addi %16, %18 : vector<16x1xi32>
    %c16_i32_11 = arith.constant 16 : i32
    %20 = vector.broadcast %c16_i32_11 : i32 to vector<16x1xi32>
    %21 = arith.cmpi slt, %19, %20 : vector<16x1xi32>
    %cst_12 = arith.constant 0.000000e+00 : f32
    %22 = vector.shape_cast %21 : vector<16x1xi1> to vector<16x1xi1>
    %23 = vector.broadcast %22 : vector<16x1xi1> to vector<16x8xi1>
    %24 = vector.broadcast %cst_12 : f32 to vector<16x8xf32>
    %25 = arith.select %23, %15, %24 : vector<16x8xi1>, vector<16x8xf32>
    %cst_13 = arith.constant dense<0.000000e+00> : vector<8xf32>
    %26 = vector.multi_reduction <add>, %25, %cst_13 [0] : vector<16x8xf32> to vector<8xf32>
    %27 = vector.shape_cast %26 : vector<8xf32> to vector<1x8xf32>
    %28 = arith.mulf %25, %25 : vector<16x8xf32>
    %cst_14 = arith.constant dense<0.000000e+00> : vector<8xf32>
    %29 = vector.multi_reduction <add>, %28, %cst_14 [0] : vector<16x8xf32> to vector<8xf32>
    %30 = vector.shape_cast %29 : vector<8xf32> to vector<1x8xf32>
    %31 = tpu.concatenate %27, %30 in 0 : vector<1x8xf32>, vector<1x8xf32> -> vector<2x8xf32>
    %32 = vector.shape_cast %31 : vector<2x8xf32> to vector<1x2x8xf32>
    %c0_15 = arith.constant 0 : index
    %c0_16 = arith.constant 0 : index
    %c0_17 = arith.constant 0 : index
    %33 = vector.load %arg4[%c0_15, %c0_16, %c0_17] : memref<1x2x8xf32, #tpu.memory_space<vmem>>, vector<1x2x8xf32>
    tpu.vector_store %arg4[%c0_15, %c0_16, %c0_17], %32 {strides = array<i32>} : memref<1x2x8xf32, #tpu.memory_space<vmem>>, vector<1x2x8xf32>,
    return
  }
  func.func @transform_0(%arg0: i32, %arg1: i32) -> (i32, i32, i32) {
    %c1_i32 = arith.constant 1 : i32
    %0 = arith.muli %arg0, %c1_i32 : i32
    %1 = arith.addi %0, %arg1 : i32
    %c0_i32 = arith.constant 0 : i32
    %c0_i32_0 = arith.constant 0 : i32
    %c0_i32_1 = arith.constant 0 : i32
    return %1, %c0_i32, %c0_i32_0 : i32, i32, i32
  }
  func.func @transform_1(%arg0: i32, %arg1: i32) -> (i32, i32, i32) {
    %c0_i32 = arith.constant 0 : i32
    %c0_i32_0 = arith.constant 0 : i32
    %c0_i32_1 = arith.constant 0 : i32
    %c0_i32_2 = arith.constant 0 : i32
    return %c0_i32, %c0_i32_0, %c0_i32_1 : i32, i32, i32
  }
  func.func @transform_2(%arg0: i32, %arg1: i32) -> (i32, i32, i32) {
    %c1_i32 = arith.constant 1 : i32
    %0 = arith.muli %arg0, %c1_i32 : i32
    %1 = arith.addi %0, %arg1 : i32
    %c0_i32 = arith.constant 0 : i32
    %c0_i32_0 = arith.constant 0 : i32
    %c0_i32_1 = arith.constant 0 : i32
    return %1, %c0_i32, %c0_i32_0 : i32, i32, i32
  }
}

module attributes {stable_mosaic.version = 11 : i64} {
  func.func @_conv2_kernel(%arg0: i32, %arg1: i32, %arg2: memref<1x22x4xf32, #tpu.memory_space<vmem>>, %arg3: memref<3x4x8xf32, #tpu.memory_space<vmem>>, %arg4: memref<3x8x8xf32, #tpu.memory_space<vmem>>, %arg5: memref<1x8xf32, #tpu.memory_space<vmem>>, %arg6: memref<1x8xf32, #tpu.memory_space<vmem>>, %arg7: memref<1x16x8xf32, #tpu.memory_space<vmem>>, %arg8: memref<1x2x8xf32, #tpu.memory_space<vmem>>) attributes {dimension_semantics = [#tpu.dimension_semantics<parallel>, #tpu.dimension_semantics<parallel>], iteration_bounds = array<i64: 2, 1>, scalar_prefetch = 0 : i64, scratch_operands = 0 : i64, tpu.core_type = #tpu.core_type<tc>, window_params = [{transform_indices = @transform_0, window_bounds = array<i64: 1, 22, 4>}, {pipeline_mode = #tpu.pipeline_mode<synchronous>, transform_indices = @transform_1, window_bounds = array<i64: 3, 4, 8>}, {pipeline_mode = #tpu.pipeline_mode<synchronous>, transform_indices = @transform_2, window_bounds = array<i64: 3, 8, 8>}, {pipeline_mode = #tpu.pipeline_mode<synchronous>, transform_indices = @transform_3, window_bounds = array<i64: 1, 8>}, {pipeline_mode = #tpu.pipeline_mode<synchronous>, transform_indices = @transform_4, window_bounds = array<i64: 1, 8>}, {transform_indices = @transform_5, window_bounds = array<i64: 1, 16, 8>}, {transform_indices = @transform_6, window_bounds = array<i64: 1, 2, 8>}]} {
    %c16_i32 = arith.constant 16 : i32
    %0 = arith.muli %arg1, %c16_i32 : i32
    %c0 = arith.constant 0 : index
    %c0_0 = arith.constant 0 : index
    %c0_1 = arith.constant 0 : index
    %1 = vector.load %arg2[%c0, %c0_0, %c0_1] : memref<1x22x4xf32, #tpu.memory_space<vmem>>, vector<1x22x4xf32>
    %2 = vector.shape_cast %1 : vector<1x22x4xf32> to vector<22x4xf32>
    %3 = vector.extract_strided_slice %2 {offsets = [0, 0], sizes = [20, 4], strides = [1, 1]} : vector<22x4xf32> to vector<20x4xf32>
    %c0_2 = arith.constant 0 : index
    %c0_3 = arith.constant 0 : index
    %c0_4 = arith.constant 0 : index
    %4 = vector.load %arg3[%c0_2, %c0_3, %c0_4] : memref<3x4x8xf32, #tpu.memory_space<vmem>>, vector<1x4x8xf32>
    %5 = vector.shape_cast %4 : vector<1x4x8xf32> to vector<4x8xf32>
    %cst = arith.constant dense<0.000000e+00> : vector<20x8xf32>
    %6 = tpu.matmul %3, %5, %cst {dimension_numbers = #tpu.dot_dimension_numbers<[1], [0], [0], [1], [0, 0, 1, 1], [], []>} : vector<20x4xf32>, vector<4x8xf32>, vector<20x8xf32> -> vector<20x8xf32>
    %7 = vector.extract_strided_slice %2 {offsets = [1, 0], sizes = [20, 4], strides = [1, 1]} : vector<22x4xf32> to vector<20x4xf32>
    %c1 = arith.constant 1 : index
    %c0_5 = arith.constant 0 : index
    %c0_6 = arith.constant 0 : index
    %8 = vector.load %arg3[%c1, %c0_5, %c0_6] : memref<3x4x8xf32, #tpu.memory_space<vmem>>, vector<1x4x8xf32>
    %9 = vector.shape_cast %8 : vector<1x4x8xf32> to vector<4x8xf32>
    %cst_7 = arith.constant dense<0.000000e+00> : vector<20x8xf32>
    %10 = tpu.matmul %7, %9, %cst_7 {dimension_numbers = #tpu.dot_dimension_numbers<[1], [0], [0], [1], [0, 0, 1, 1], [], []>} : vector<20x4xf32>, vector<4x8xf32>, vector<20x8xf32> -> vector<20x8xf32>
    %11 = arith.addf %6, %10 : vector<20x8xf32>
    %12 = vector.extract_strided_slice %2 {offsets = [2, 0], sizes = [20, 4], strides = [1, 1]} : vector<22x4xf32> to vector<20x4xf32>
    %c2 = arith.constant 2 : index
    %c0_8 = arith.constant 0 : index
    %c0_9 = arith.constant 0 : index
    %13 = vector.load %arg3[%c2, %c0_8, %c0_9] : memref<3x4x8xf32, #tpu.memory_space<vmem>>, vector<1x4x8xf32>
    %14 = vector.shape_cast %13 : vector<1x4x8xf32> to vector<4x8xf32>
    %cst_10 = arith.constant dense<0.000000e+00> : vector<20x8xf32>
    %15 = tpu.matmul %12, %14, %cst_10 {dimension_numbers = #tpu.dot_dimension_numbers<[1], [0], [0], [1], [0, 0, 1, 1], [], []>} : vector<20x4xf32>, vector<4x8xf32>, vector<20x8xf32> -> vector<20x8xf32>
    %16 = arith.addf %11, %15 : vector<20x8xf32>
    %17 = tpu.iota {dimensions = array<i32: 0>} : vector<20x1xi32>
    %c2_i32 = arith.constant 2 : i32
    %18 = arith.subi %0, %c2_i32 : i32
    %19 = vector.broadcast %18 : i32 to vector<20x1xi32>
    %20 = arith.addi %17, %19 : vector<20x1xi32>
    %c0_i32 = arith.constant 0 : i32
    %21 = vector.broadcast %c0_i32 : i32 to vector<20x1xi32>
    %22 = arith.cmpi sge, %20, %21 : vector<20x1xi32>
    %c16_i32_11 = arith.constant 16 : i32
    %23 = vector.broadcast %c16_i32_11 : i32 to vector<20x1xi32>
    %24 = arith.cmpi slt, %20, %23 : vector<20x1xi32>
    %25 = arith.andi %22, %24 : vector<20x1xi1>
    %c0_12 = arith.constant 0 : index
    %c0_13 = arith.constant 0 : index
    %26 = vector.load %arg5[%c0_12, %c0_13] : memref<1x8xf32, #tpu.memory_space<vmem>>, vector<1x8xf32>
    %27 = vector.broadcast %26 : vector<1x8xf32> to vector<20x8xf32>
    %28 = arith.mulf %16, %27 : vector<20x8xf32>
    %c0_14 = arith.constant 0 : index
    %c0_15 = arith.constant 0 : index
    %29 = vector.load %arg6[%c0_14, %c0_15] : memref<1x8xf32, #tpu.memory_space<vmem>>, vector<1x8xf32>
    %30 = vector.broadcast %29 : vector<1x8xf32> to vector<20x8xf32>
    %31 = arith.addf %28, %30 : vector<20x8xf32>
    %cst_16 = arith.constant 0.000000e+00 : f32
    %32 = vector.broadcast %cst_16 : f32 to vector<20x8xf32>
    %33 = arith.maximumf %31, %32 : vector<20x8xf32>
    %cst_17 = arith.constant 0.000000e+00 : f32
    %34 = vector.shape_cast %25 : vector<20x1xi1> to vector<20x1xi1>
    %35 = vector.broadcast %34 : vector<20x1xi1> to vector<20x8xi1>
    %36 = vector.broadcast %cst_17 : f32 to vector<20x8xf32>
    %37 = arith.select %35, %33, %36 : vector<20x8xi1>, vector<20x8xf32>
    %38 = vector.extract_strided_slice %37 {offsets = [0, 0], sizes = [16, 8], strides = [1, 1]} : vector<20x8xf32> to vector<16x8xf32>
    %c0_18 = arith.constant 0 : index
    %c0_19 = arith.constant 0 : index
    %c0_20 = arith.constant 0 : index
    %39 = vector.load %arg4[%c0_18, %c0_19, %c0_20] : memref<3x8x8xf32, #tpu.memory_space<vmem>>, vector<1x8x8xf32>
    %40 = vector.shape_cast %39 : vector<1x8x8xf32> to vector<8x8xf32>
    %cst_21 = arith.constant dense<0.000000e+00> : vector<16x8xf32>
    %41 = tpu.matmul %38, %40, %cst_21 {dimension_numbers = #tpu.dot_dimension_numbers<[1], [0], [0], [1], [0, 0, 1, 1], [], []>} : vector<16x8xf32>, vector<8x8xf32>, vector<16x8xf32> -> vector<16x8xf32>
    %42 = vector.extract_strided_slice %37 {offsets = [2, 0], sizes = [16, 8], strides = [1, 1]} : vector<20x8xf32> to vector<16x8xf32>
    %c1_22 = arith.constant 1 : index
    %c0_23 = arith.constant 0 : index
    %c0_24 = arith.constant 0 : index
    %43 = vector.load %arg4[%c1_22, %c0_23, %c0_24] : memref<3x8x8xf32, #tpu.memory_space<vmem>>, vector<1x8x8xf32>
    %44 = vector.shape_cast %43 : vector<1x8x8xf32> to vector<8x8xf32>
    %cst_25 = arith.constant dense<0.000000e+00> : vector<16x8xf32>
    %45 = tpu.matmul %42, %44, %cst_25 {dimension_numbers = #tpu.dot_dimension_numbers<[1], [0], [0], [1], [0, 0, 1, 1], [], []>} : vector<16x8xf32>, vector<8x8xf32>, vector<16x8xf32> -> vector<16x8xf32>
    %46 = arith.addf %41, %45 : vector<16x8xf32>
    %47 = vector.extract_strided_slice %37 {offsets = [4, 0], sizes = [16, 8], strides = [1, 1]} : vector<20x8xf32> to vector<16x8xf32>
    %c2_26 = arith.constant 2 : index
    %c0_27 = arith.constant 0 : index
    %c0_28 = arith.constant 0 : index
    %48 = vector.load %arg4[%c2_26, %c0_27, %c0_28] : memref<3x8x8xf32, #tpu.memory_space<vmem>>, vector<1x8x8xf32>
    %49 = vector.shape_cast %48 : vector<1x8x8xf32> to vector<8x8xf32>
    %cst_29 = arith.constant dense<0.000000e+00> : vector<16x8xf32>
    %50 = tpu.matmul %47, %49, %cst_29 {dimension_numbers = #tpu.dot_dimension_numbers<[1], [0], [0], [1], [0, 0, 1, 1], [], []>} : vector<16x8xf32>, vector<8x8xf32>, vector<16x8xf32> -> vector<16x8xf32>
    %51 = arith.addf %46, %50 : vector<16x8xf32>
    %52 = vector.shape_cast %51 : vector<16x8xf32> to vector<1x16x8xf32>
    %c0_30 = arith.constant 0 : index
    %c0_31 = arith.constant 0 : index
    %c0_32 = arith.constant 0 : index
    %53 = vector.load %arg7[%c0_30, %c0_31, %c0_32] : memref<1x16x8xf32, #tpu.memory_space<vmem>>, vector<1x16x8xf32>
    tpu.vector_store %arg7[%c0_30, %c0_31, %c0_32], %52 {strides = array<i32>} : memref<1x16x8xf32, #tpu.memory_space<vmem>>, vector<1x16x8xf32>,
    %54 = tpu.iota {dimensions = array<i32: 0>} : vector<16x1xi32>
    %55 = vector.broadcast %0 : i32 to vector<16x1xi32>
    %56 = arith.addi %54, %55 : vector<16x1xi32>
    %c16_i32_33 = arith.constant 16 : i32
    %57 = vector.broadcast %c16_i32_33 : i32 to vector<16x1xi32>
    %58 = arith.cmpi slt, %56, %57 : vector<16x1xi32>
    %cst_34 = arith.constant 0.000000e+00 : f32
    %59 = vector.shape_cast %58 : vector<16x1xi1> to vector<16x1xi1>
    %60 = vector.broadcast %59 : vector<16x1xi1> to vector<16x8xi1>
    %61 = vector.broadcast %cst_34 : f32 to vector<16x8xf32>
    %62 = arith.select %60, %51, %61 : vector<16x8xi1>, vector<16x8xf32>
    %cst_35 = arith.constant dense<0.000000e+00> : vector<8xf32>
    %63 = vector.multi_reduction <add>, %62, %cst_35 [0] : vector<16x8xf32> to vector<8xf32>
    %64 = vector.shape_cast %63 : vector<8xf32> to vector<1x8xf32>
    %65 = arith.mulf %62, %62 : vector<16x8xf32>
    %cst_36 = arith.constant dense<0.000000e+00> : vector<8xf32>
    %66 = vector.multi_reduction <add>, %65, %cst_36 [0] : vector<16x8xf32> to vector<8xf32>
    %67 = vector.shape_cast %66 : vector<8xf32> to vector<1x8xf32>
    %68 = tpu.concatenate %64, %67 in 0 : vector<1x8xf32>, vector<1x8xf32> -> vector<2x8xf32>
    %69 = vector.shape_cast %68 : vector<2x8xf32> to vector<1x2x8xf32>
    %c0_37 = arith.constant 0 : index
    %c0_38 = arith.constant 0 : index
    %c0_39 = arith.constant 0 : index
    %70 = vector.load %arg8[%c0_37, %c0_38, %c0_39] : memref<1x2x8xf32, #tpu.memory_space<vmem>>, vector<1x2x8xf32>
    tpu.vector_store %arg8[%c0_37, %c0_38, %c0_39], %69 {strides = array<i32>} : memref<1x2x8xf32, #tpu.memory_space<vmem>>, vector<1x2x8xf32>,
    return
  }
  func.func @transform_0(%arg0: i32, %arg1: i32) -> (i32, i32, i32) {
    %c1_i32 = arith.constant 1 : i32
    %0 = arith.muli %arg0, %c1_i32 : i32
    %1 = arith.addi %0, %arg1 : i32
    %c0_i32 = arith.constant 0 : i32
    %c0_i32_0 = arith.constant 0 : i32
    %c0_i32_1 = arith.constant 0 : i32
    return %1, %c0_i32, %c0_i32_0 : i32, i32, i32
  }
  func.func @transform_1(%arg0: i32, %arg1: i32) -> (i32, i32, i32) {
    %c0_i32 = arith.constant 0 : i32
    %c0_i32_0 = arith.constant 0 : i32
    %c0_i32_1 = arith.constant 0 : i32
    %c0_i32_2 = arith.constant 0 : i32
    return %c0_i32, %c0_i32_0, %c0_i32_1 : i32, i32, i32
  }
  func.func @transform_2(%arg0: i32, %arg1: i32) -> (i32, i32, i32) {
    %c0_i32 = arith.constant 0 : i32
    %c0_i32_0 = arith.constant 0 : i32
    %c0_i32_1 = arith.constant 0 : i32
    %c0_i32_2 = arith.constant 0 : i32
    return %c0_i32, %c0_i32_0, %c0_i32_1 : i32, i32, i32
  }
  func.func @transform_3(%arg0: i32, %arg1: i32) -> (i32, i32) {
    %c0_i32 = arith.constant 0 : i32
    %c0_i32_0 = arith.constant 0 : i32
    %c0_i32_1 = arith.constant 0 : i32
    return %c0_i32, %c0_i32_0 : i32, i32
  }
  func.func @transform_4(%arg0: i32, %arg1: i32) -> (i32, i32) {
    %c0_i32 = arith.constant 0 : i32
    %c0_i32_0 = arith.constant 0 : i32
    %c0_i32_1 = arith.constant 0 : i32
    return %c0_i32, %c0_i32_0 : i32, i32
  }
  func.func @transform_5(%arg0: i32, %arg1: i32) -> (i32, i32, i32) {
    %c0_i32 = arith.constant 0 : i32
    %c0_i32_0 = arith.constant 0 : i32
    return %arg0, %arg1, %c0_i32 : i32, i32, i32
  }
  func.func @transform_6(%arg0: i32, %arg1: i32) -> (i32, i32, i32) {
    %c1_i32 = arith.constant 1 : i32
    %0 = arith.muli %arg0, %c1_i32 : i32
    %1 = arith.addi %0, %arg1 : i32
    %c0_i32 = arith.constant 0 : i32
    %c0_i32_0 = arith.constant 0 : i32
    %c0_i32_1 = arith.constant 0 : i32
    return %1, %c0_i32, %c0_i32_0 : i32, i32, i32
  }
}

</mosaic_0001>

<llo_original>
// kernel: conv_pre_wav_block.3
$region0: #{conv_pre_wav_block.3}
  #allocation0 [shape = 'u32[]', space=smem, size = 0x4, offset = 0x4, fixed_abs, tag = 'smem constant byte address 0x4 - core index']
  #allocation1 [shape = 'u32[144,128]{1,0:T(1,128)}', space=vmem, size = 0x12000, scoped, tag = 'internal scratch']
  %s0 = inlined_call_operand.vmem [shape: f32[2,22,4], index: 0, kind: input, shape index: {}]
  %s1 = inlined_call_operand.vmem [shape: f32[3,4,8], index: 1, kind: input, shape index: {}]
  %s2 = inlined_call_operand.vmem [shape: f32[2,2,8], index: 2, kind: output, shape index: {}]
  %s3 = sld [smem:[#allocation0]]
  $region41: #{conv_pre_wav_block.3} parent=0
    _
  %s5 = ssub.s32 1, %s3
  %s6 = scalar_select 0, %s5, %s3
  loop: start=0, step=1, limit=4
  $region2: #{conv_pre_wav_block.3} parent=0 // loop_pre_header
    _
  $region3: #{conv_pre_wav_block.3} parent=0 // loop_header
    %s8 = sphi 0, %s12
    %p9 = scmp.ge.s32.totalorder %s8, 4
    %s15 = sphi 0, %s27
    %s16 = sphi 0, %s23
    %s17 = sphi 0, %s15
    %s18 = sphi 0, %s16
    %s19 = sphi 0, %s17
    %s20 = sphi 0, %s18
    %s32 = sphi 0, %s34
    %s35 = sphi 0, %s32
    %s36 = sphi 0, %s35
    %s52 = sphi 0, %s36
    %s56 = sphi 0, %s56
    %s58 = sphi 0, %s56
    %s59 = sphi 0, %s58
    %s73 = sphi 0, %s59
    %s81 = sphi 0, %s83
    %s84 = sphi 0, %s81
    %s85 = sphi 0, %s84
    %s101 = sphi 0, %s85
  $region4: #{conv_pre_wav_block.3} parent=0 // loop_header_branch
    %11 = sbr.rel (%p9) target = $region8
  $region5: #{conv_pre_wav_block.3} parent=0 // loop_body
    %s13 = ssub.s32 %s8, 1
    %s14 = ssub.s32 %s8, 2
    %s21 = sadd.s32 1, %s16
    %p22 = scmp.ge.s32.totalorder %s21, 1
    %s23 = scalar_select %p22, 0, %s21
    %s24 = sadd.s32 1, %s15
    %s25 = scalar_select %p22, %s24, %s15
    %p26 = scmp.ge.s32.totalorder %s25, 2
    %s27 = scalar_select %p26, 0, %s25
    %s28 = sadd.s32 %s15, %s16
    %s29 = sadd.s32 %s27, %s23
    %s30 = ssub.s32 %s28, %s29
    %p31 = scmp.eq.s32.totalorder %s30, 0
    %s33 = sadd.s32 %s32, 1
    %s34 = scalar_select %p31, %s32, %s33
    %p37 = pneg %p31
    %p38 = scmp.eq.s32.totalorder %s8, 1
    %p39 = por %p37, %p38
    %p40 = scmp.ne.s32.totalorder %s32, %s35
    %p41 = scmp.eq.s32.totalorder %s8, 0
    %p42 = por %p40, %p41
    %p43 = scmp.ne.s32.totalorder %s32, %s35
    %p44 = scmp.eq.s32.totalorder %s13, 1
    %p45 = por %p43, %p44
    %p46 = scmp.ne.s32.totalorder %s35, %s36
    %p47 = scmp.eq.s32.totalorder %s13, 0
    %p48 = por %p46, %p47
    %p49 = scmp.ne.s32.totalorder %s35, %s36
    %p50 = scmp.eq.s32.totalorder %s14, 1
    %p51 = por %p49, %p50
    %p53 = scmp.ne.s32.totalorder %s36, %s52
    %p54 = scmp.eq.s32.totalorder %s14, 0
    %p55 = por %p53, %p54
    %s57 = sadd.s32 %s56, 1
    %p60 = scmp.eq.s32.totalorder %s8, 1
    %p61 = scmp.ne.s32.totalorder %s56, %s58
    %p62 = scmp.eq.s32.totalorder %s8, 0
    %p63 = por %p61, %p62
    %p64 = scmp.ne.s32.totalorder %s56, %s58
    %p65 = scmp.eq.s32.totalorder %s13, 1
    %p66 = por %p64, %p65
    %p67 = scmp.ne.s32.totalorder %s58, %s59
    %p68 = scmp.eq.s32.totalorder %s13, 0
    %p69 = por %p67, %p68
    %p70 = scmp.ne.s32.totalorder %s58, %s59
    %p71 = scmp.eq.s32.totalorder %s14, 1
    %p72 = por %p70, %p71
    %p74 = scmp.ne.s32.totalorder %s59, %s73
    %p75 = scmp.eq.s32.totalorder %s14, 0
    %p76 = por %p74, %p75
    %s77 = sadd.s32 %s15, %s16
    %s78 = sadd.s32 %s27, %s23
    %s79 = ssub.s32 %s77, %s78
    %p80 = scmp.eq.s32.totalorder %s79, 0
    %s82 = sadd.s32 %s81, 1
    %s83 = scalar_select %p80, %s81, %s82
    %p86 = pneg %p80
    %p87 = scmp.eq.s32.totalorder %s8, 1
    %p88 = por %p86, %p87
    %p89 = scmp.ne.s32.totalorder %s81, %s84
    %p90 = scmp.eq.s32.totalorder %s8, 0
    %p91 = por %p89, %p90
    %p92 = scmp.ne.s32.totalorder %s81, %s84
    %p93 = scmp.eq.s32.totalorder %s13, 1
    %p94 = por %p92, %p93
    %p95 = scmp.ne.s32.totalorder %s84, %s85
    %p96 = scmp.eq.s32.totalorder %s13, 0
    %p97 = por %p95, %p96
    %p98 = scmp.ne.s32.totalorder %s84, %s85
    %p99 = scmp.eq.s32.totalorder %s14, 1
    %p100 = por %p98, %p99
    %p102 = scmp.ne.s32.totalorder %s85, %s101
    %p103 = scmp.eq.s32.totalorder %s14, 0
    %p104 = por %p102, %p103
    %p105 = scmp.le.s32.totalorder 1, %s8
    %p106 = scmp.lt.s32.totalorder %s8, 3
    %p107 = pnand %p105, %p106
    %p108 = pneg %p107
    // Predicated region
    $region9: #{conv_pre_wav_block.3} parent=5 // pred_check
      _
    $region10: #{conv_pre_wav_block.3} parent=5 // pred_check_branch
      %110 = sbr.rel (%p107) target = $region12
    $region11: #{conv_pre_wav_block.3} parent=5 // pred_region
      %s111 = ssub.s32 %s8, 1
      // Predicated region
      $region13: #{conv_pre_wav_block.3} parent=11 // pred_check
        %p112 = pneg %p69
      $region14: #{conv_pre_wav_block.3} parent=11 // pred_check_branch
        %114 = sbr.rel (%p112) target = $region16
      $region15: #{conv_pre_wav_block.3} parent=11 // pred_region
        _
      $region16: #{conv_pre_wav_block.3} parent=11 // pred_fallthru
        _
    $region12: #{conv_pre_wav_block.3} parent=5 // pred_fallthru
      _
    %p115 = scmp.lt.s32.totalorder %s8, 2
    // Predicated region
    $region17: #{conv_pre_wav_block.3} parent=5 // pred_check
      %p116 = pneg %p115
    $region18: #{conv_pre_wav_block.3} parent=5 // pred_check_branch
      %118 = sbr.rel (%p116) target = $region20
    $region19: #{conv_pre_wav_block.3} parent=5 // pred_region
      // Predicated region
      $region21: #{conv_pre_wav_block.3} parent=19 // pred_check
        %p119 = pneg %p42
      $region22: #{conv_pre_wav_block.3} parent=19 // pred_check_branch
        %121 = sbr.rel (%p119) target = $region24
      $region23: #{conv_pre_wav_block.3} parent=19 // pred_region
        %s122 = sadd.s32 %s15, %s16
        %p123 = scmp.lt.s32.totalorder %s122, 1
        %s124 = scalar_select %p123, %s122, 1
        %s125 = smul.addr %s124, 3
        %s126 = smul.addr %s125, 8
        %s127 = scalar_lea.vmem %s0, %s126
        %s128 = sadd.s32 %s15, %s16
      $region24: #{conv_pre_wav_block.3} parent=19 // pred_fallthru
        _
    $region20: #{conv_pre_wav_block.3} parent=5 // pred_fallthru
      _
    %p129 = scmp.le.s32.totalorder 1, %s8
    %p130 = scmp.lt.s32.totalorder %s8, 3
    %p131 = pnand %p129, %p130
    %p132 = pneg %p131
    // Predicated region
    $region25: #{conv_pre_wav_block.3} parent=5 // pred_check
      _
    $region26: #{conv_pre_wav_block.3} parent=5 // pred_check_branch
      %134 = sbr.rel (%p131) target = $region28
    $region27: #{conv_pre_wav_block.3} parent=5 // pred_region
      %s135 = ssub.s32 %s8, 1
      %s136 = sadd.s32 %s17, %s18
      %p137 = scmp.lt.s32.totalorder %s136, 1
      %s138 = scalar_select %p137, %s136, 1
      %s139 = smul.addr %s138, 3
      %s140 = smul.addr %s139, 8
      %s141 = scalar_lea.vmem %s0, %s140
      %p142 = pneg %p48
      %p143 = pneg %p45
      %p144 = pneg %p69
      %p145 = pneg %p66
      %p146 = pneg %p97
      %p147 = pneg %p94
      %s148 = sadd.s32 %s17, %s18
      %p149 = scmp.lt.s32.totalorder %s148, 1
      %s150 = scalar_select %p149, %s148, 1
      %s151 = smul.addr %s150, 2
      %s152 = scalar_lea.vmem %s2, %s151
      %s153 = sadd.s32 %s17, %s18
      %p154 = scmp.lt.s32.totalorder %s153, 1
      %s155 = scalar_select %p154, %s153, 1
      %s156 = smul.addr %s155, 3
      %s157 = smul.addr %s156, 8
      %s158 = scalar_lea.vmem %s0, %s157
      %s159 = sadd.s32 %s17, %s18
      %s160 = sadd.s32 %s17, %s18
      %p161 = scmp.lt.s32.totalorder %s160, 1
      %s162 = scalar_select %p161, %s160, 1
      %s163 = smul.addr %s162, 2
      %s164 = scalar_lea.vmem %s2, %s163
      %s165 = sadd.s32 %s17, %s18
      %v166 = vld [vmem:[%s158] sm:$0xff]
      %v167 = vld [vmem:[%s158 + $0x8] sm:$0xff]
      %v168 = vld [vmem:[%s158 + $0x10] sm:$0x3f]
      %v169 = vld [vmem:[%s1] sm:$0xf]
      %s170 = scalar_lea.vmem %s1, 4
      %v171 = vld [vmem:[%s170] sm:$0xf]
      %vm175 = vcmask 1044480
      %v176 = vrot.slane %v166, 3
      %v177 = vrot.slane %v167, 3
      %v178 = vsel %vm175, %v176, %v177
      %v179 = vrot.slane %v168, 3
      %v180 = vsel %vm175, %v177, %v179
      %vm181 = vcmask 31744
      %v182 = vsel %vm181, %v178, 0
      %v184 = vsel %vm181, %v180, 0
      %vm186 = vcmask 1043456
      %v188 = vsel %vm186, %v171, 0
      %190 = vmatprep.subr.mxu0 0.0
      %191 = vmatpush1.msra.mxu0 %v188
      %192 = vmatprep.subr.mxu0 0.0
      %193 = vmatpush1.msra.mxu0 0.0
      %194 = vmatprep.subr.mxu0 0.0
      %195 = vmatpush1.msra.mxu0 0.0
      %196 = vmatprep.subr.mxu0 0.0
      %197 = vmatpush1.msra.mxu0 0.0
      %198 = vmatprep.subr.mxu0 0.0
      %199 = vmatpush1.msra.mxu0 0.0
      %200 = vmatprep.subr.mxu0 0.0
      %201 = vmatpush1.msra.mxu0 0.0
      %202 = vmatprep.subr.mxu0 0.0
      %203 = vmatpush1.msra.mxu0 0.0
      %204 = vmatprep.subr.mxu0 0.0
      %205 = vmatpush1.msra.mxu0 0.0
      %206 = vmatprep.subr.mxu0 0.0
      %207 = vmatpush1.msra.mxu0 0.0
      %208 = vmatprep.subr.mxu0 0.0
      %209 = vmatpush1.msra.mxu0 0.0
      %210 = vmatprep.subr.mxu0 0.0
      %211 = vmatpush1.msra.mxu0 0.0
      %212 = vmatprep.subr.mxu0 0.0
      %213 = vmatpush1.msra.mxu0 0.0
      %214 = vmatprep.subr.mxu0 0.0
      %215 = vmatpush1.msra.mxu0 0.0
      %216 = vmatprep.subr.mxu0 0.0
      %217 = vmatpush1.msra.mxu0 0.0
      %218 = vmatprep.subr.mxu0 0.0
      %219 = vmatpush1.msra.mxu0 0.0
      %220 = vmatprep.subr.mxu0 0.0
      %221 = vmatpush1.msra.mxu0 0.0
      %222 = vmatprep.subr.mxu0 0.0
      %223 = vmatpush1.msra.mxu0 0.0
      %224 = vmatprep.subr.mxu0 0.0
      %225 = vmatpush1.msra.mxu0 0.0
      %226 = vmatprep.subr.mxu0 0.0
      %227 = vmatpush1.msra.mxu0 0.0
      %228 = vmatprep.subr.mxu0 0.0
      %229 = vmatpush1.msra.mxu0 0.0
      %230 = vmatprep.subr.mxu0 0.0
      %231 = vmatpush1.msra.mxu0 0.0
      %232 = vmatprep.subr.mxu0 0.0
      %233 = vmatpush1.msra.mxu0 0.0
      %234 = vmatprep.subr.mxu0 0.0
      %235 = vmatpush1.msra.mxu0 0.0
      %236 = vmatprep.subr.mxu0 0.0
      %237 = vmatpush1.msra.mxu0 0.0
      %238 = vmatprep.subr.mxu0 0.0
      %239 = vmatpush1.msra.mxu0 0.0
      %240 = vmatprep.subr.mxu0 0.0
      %241 = vmatpush1.msra.mxu0 0.0
      %242 = vmatprep.subr.mxu0 0.0
      %243 = vmatpush1.msra.mxu0 0.0
      %244 = vmatprep.subr.mxu0 0.0
      %245 = vmatpush1.msra.mxu0 0.0
      %246 = vmatprep.subr.mxu0 0.0
      %247 = vmatpush1.msra.mxu0 0.0
      %248 = vmatprep.subr.mxu0 0.0
      %249 = vmatpush1.msra.mxu0 0.0
      %250 = vmatprep.subr.mxu0 0.0
      %251 = vmatpush1.msra.mxu0 0.0
      %252 = vmatprep.subr.mxu0 0.0
      %253 = vmatpush1.msra.mxu0 0.0
      %254 = vmatprep.mubr.f32.mxu0 0.0
      %255 = vmatmul.mubr.f32.gmra.mrb[0].mxu0 %v182
      %v256 = vpop.f32.mrb[0].mxu0
      %v257 = vadd.f32 0.0, %v256
      %v258 = vpop.f32.mrb[0].mxu0
      %259 = vmatprep.mubr.f32.mxu0 0.0
      %260 = vmatmul.mubr.f32.gmra.mrb[0].mxu0 %v184
      %v261 = vpop.f32.mrb[0].mxu0
      %v262 = vadd.f32 0.0, %v261
      %v263 = vpop.f32.mrb[0].mxu0
      %264 = vdwg.mxu0
      %vm265 = vcmask 1045504
      %v266 = vrot.slane %v166, 2
      %v267 = vrot.slane %v167, 2
      %v268 = vsel %vm265, %v266, %v267
      %v269 = vrot.slane %v168, 2
      %v270 = vsel %vm265, %v267, %v269
      %v271 = vsel %vm181, %v268, 0
      %v273 = vsel %vm181, %v270, 0
      %v276 = vsel %vm186, %v169, 0
      %278 = vmatprep.subr.mxu0 0.0
      %279 = vmatpush1.msra.mxu0 %v276
      %280 = vmatprep.subr.mxu0 0.0
      %281 = vmatpush1.msra.mxu0 0.0
      %282 = vmatprep.subr.mxu0 0.0
      %283 = vmatpush1.msra.mxu0 0.0
      %284 = vmatprep.subr.mxu0 0.0
      %285 = vmatpush1.msra.mxu0 0.0
      %286 = vmatprep.subr.mxu0 0.0
      %287 = vmatpush1.msra.mxu0 0.0
      %288 = vmatprep.subr.mxu0 0.0
      %289 = vmatpush1.msra.mxu0 0.0
      %290 = vmatprep.subr.mxu0 0.0
      %291 = vmatpush1.msra.mxu0 0.0
      %292 = vmatprep.subr.mxu0 0.0
      %293 = vmatpush1.msra.mxu0 0.0
      %294 = vmatprep.subr.mxu0 0.0
      %295 = vmatpush1.msra.mxu0 0.0
      %296 = vmatprep.subr.mxu0 0.0
      %297 = vmatpush1.msra.mxu0 0.0
      %298 = vmatprep.subr.mxu0 0.0
      %299 = vmatpush1.msra.mxu0 0.0
      %300 = vmatprep.subr.mxu0 0.0
      %301 = vmatpush1.msra.mxu0 0.0
      %302 = vmatprep.subr.mxu0 0.0
      %303 = vmatpush1.msra.mxu0 0.0
      %304 = vmatprep.subr.mxu0 0.0
      %305 = vmatpush1.msra.mxu0 0.0
      %306 = vmatprep.subr.mxu0 0.0
      %307 = vmatpush1.msra.mxu0 0.0
      %308 = vmatprep.subr.mxu0 0.0
      %309 = vmatpush1.msra.mxu0 0.0
      %310 = vmatprep.subr.mxu0 0.0
      %311 = vmatpush1.msra.mxu0 0.0
      %312 = vmatprep.subr.mxu0 0.0
      %313 = vmatpush1.msra.mxu0 0.0
      %314 = vmatprep.subr.mxu0 0.0
      %315 = vmatpush1.msra.mxu0 0.0
      %316 = vmatprep.subr.mxu0 0.0
      %317 = vmatpush1.msra.mxu0 0.0
      %318 = vmatprep.subr.mxu0 0.0
      %319 = vmatpush1.msra.mxu0 0.0
      %320 = vmatprep.subr.mxu0 0.0
      %321 = vmatpush1.msra.mxu0 0.0
      %322 = vmatprep.subr.mxu0 0.0
      %323 = vmatpush1.msra.mxu0 0.0
      %324 = vmatprep.subr.mxu0 0.0
      %325 = vmatpush1.msra.mxu0 0.0
      %326 = vmatprep.subr.mxu0 0.0
      %327 = vmatpush1.msra.mxu0 0.0
      %328 = vmatprep.subr.mxu0 0.0
      %329 = vmatpush1.msra.mxu0 0.0
      %330 = vmatprep.subr.mxu0 0.0
      %331 = vmatpush1.msra.mxu0 0.0
      %332 = vmatprep.subr.mxu0 0.0
      %333 = vmatpush1.msra.mxu0 0.0
      %334 = vmatprep.subr.mxu0 0.0
      %335 = vmatpush1.msra.mxu0 0.0
      %336 = vmatprep.subr.mxu0 0.0
      %337 = vmatpush1.msra.mxu0 0.0
      %338 = vmatprep.subr.mxu0 0.0
      %339 = vmatpush1.msra.mxu0 0.0
      %340 = vmatprep.subr.mxu0 0.0
      %341 = vmatpush1.msra.mxu0 0.0
      %342 = vmatprep.mubr.f32.mxu0 0.0
      %343 = vmatmul.mubr.f32.gmra.mrb[0].mxu0 %v271
      %v344 = vpop.f32.mrb[0].mxu0
      %v345 = vadd.f32 %v257, %v344
      %v346 = vpop.f32.mrb[0].mxu0
      %347 = vmatprep.mubr.f32.mxu0 0.0
      %348 = vmatmul.mubr.f32.gmra.mrb[0].mxu0 %v273
      %v349 = vpop.f32.mrb[0].mxu0
      %v350 = vadd.f32 %v262, %v349
      %v351 = vpop.f32.mrb[0].mxu0
      %352 = vdwg.mxu0
      %s353 = scalar_lea.vmem %s1, 8
      %v354 = vld [vmem:[%s353] sm:$0xf]
      %v355 = vrot.slane %v166, 4
      %v356 = vrot.slane %v167, 4
      %v357 = vsel %vm186, %v355, %v356
      %v358 = vrot.slane %v168, 4
      %v359 = vsel %vm186, %v356, %v358
      %v360 = vsel %vm181, %v357, 0
      %v362 = vsel %vm181, %v359, 0
      %v365 = vsel %vm186, %v354, 0
      %367 = vmatprep.subr.mxu0 0.0
      %368 = vmatpush1.msra.mxu0 %v365
      %369 = vmatprep.subr.mxu0 0.0
      %370 = vmatpush1.msra.mxu0 0.0
      %371 = vmatprep.subr.mxu0 0.0
      %372 = vmatpush1.msra.mxu0 0.0
      %373 = vmatprep.subr.mxu0 0.0
      %374 = vmatpush1.msra.mxu0 0.0
      %375 = vmatprep.subr.mxu0 0.0
      %376 = vmatpush1.msra.mxu0 0.0
      %377 = vmatprep.subr.mxu0 0.0
      %378 = vmatpush1.msra.mxu0 0.0
      %379 = vmatprep.subr.mxu0 0.0
      %380 = vmatpush1.msra.mxu0 0.0
      %381 = vmatprep.subr.mxu0 0.0
      %382 = vmatpush1.msra.mxu0 0.0
      %383 = vmatprep.subr.mxu0 0.0
      %384 = vmatpush1.msra.mxu0 0.0
      %385 = vmatprep.subr.mxu0 0.0
      %386 = vmatpush1.msra.mxu0 0.0
      %387 = vmatprep.subr.mxu0 0.0
      %388 = vmatpush1.msra.mxu0 0.0
      %389 = vmatprep.subr.mxu0 0.0
      %390 = vmatpush1.msra.mxu0 0.0
      %391 = vmatprep.subr.mxu0 0.0
      %392 = vmatpush1.msra.mxu0 0.0
      %393 = vmatprep.subr.mxu0 0.0
      %394 = vmatpush1.msra.mxu0 0.0
      %395 = vmatprep.subr.mxu0 0.0
      %396 = vmatpush1.msra.mxu0 0.0
      %397 = vmatprep.subr.mxu0 0.0
      %398 = vmatpush1.msra.mxu0 0.0
      %399 = vmatprep.subr.mxu0 0.0
      %400 = vmatpush1.msra.mxu0 0.0
      %401 = vmatprep.subr.mxu0 0.0
      %402 = vmatpush1.msra.mxu0 0.0
      %403 = vmatprep.subr.mxu0 0.0
      %404 = vmatpush1.msra.mxu0 0.0
      %405 = vmatprep.subr.mxu0 0.0
      %406 = vmatpush1.msra.mxu0 0.0
      %407 = vmatprep.subr.mxu0 0.0
      %408 = vmatpush1.msra.mxu0 0.0
      %409 = vmatprep.subr.mxu0 0.0
      %410 = vmatpush1.msra.mxu0 0.0
      %411 = vmatprep.subr.mxu0 0.0
      %412 = vmatpush1.msra.mxu0 0.0
      %413 = vmatprep.subr.mxu0 0.0
      %414 = vmatpush1.msra.mxu0 0.0
      %415 = vmatprep.subr.mxu0 0.0
      %416 = vmatpush1.msra.mxu0 0.0
      %417 = vmatprep.subr.mxu0 0.0
      %418 = vmatpush1.msra.mxu0 0.0
      %419 = vmatprep.subr.mxu0 0.0
      %420 = vmatpush1.msra.mxu0 0.0
      %421 = vmatprep.subr.mxu0 0.0
      %422 = vmatpush1.msra.mxu0 0.0
      %423 = vmatprep.subr.mxu0 0.0
      %424 = vmatpush1.msra.mxu0 0.0
      %425 = vmatprep.subr.mxu0 0.0
      %426 = vmatpush1.msra.mxu0 0.0
      %427 = vmatprep.subr.mxu0 0.0
      %428 = vmatpush1.msra.mxu0 0.0
      %429 = vmatprep.subr.mxu0 0.0
      %430 = vmatpush1.msra.mxu0 0.0
      %431 = vmatprep.mubr.f32.mxu0 0.0
      %432 = vmatmul.mubr.f32.gmra.mrb[0].mxu0 %v360
      %v433 = vpop.f32.mrb[0].mxu0
      %v434 = vadd.f32 0.0, %v433
      %v435 = vpop.f32.mrb[0].mxu0
      %436 = vmatprep.mubr.f32.mxu0 0.0
      %437 = vmatmul.mubr.f32.gmra.mrb[0].mxu0 %v362
      %v438 = vpop.f32.mrb[0].mxu0
      %v439 = vadd.f32 0.0, %v438
      %v440 = vpop.f32.mrb[0].mxu0
      %441 = vdwg.mxu0
      %v442 = vadd.f32 %v345, %v434
      %v443 = vadd.f32 %v350, %v439
      %v444 = vlaneseq
      %v445 = vshrl.u32 %v444, 7
      %v446 = vadd.s32 %v445, 8
      %s447 = smul.u32 %s18, 16
      %v448 = vstv %s447
      %v449 = vadd.s32 %v445, %v448
      %v450 = vadd.s32 %v446, %v448
      %vm451 = vcmp.lt.s32.totalorder %v449, 16
      %vm452 = vcmp.lt.s32.totalorder %v450, 16
      %v453 = vsel %vm451, 1, 0
      %v454 = vsel %vm452, 1, 0
      %vm455 = vcmp.eq.s32.totalorder %v453, 1
      %vm456 = vcmp.eq.s32.totalorder %v454, 1
      %v457 = vsel %vm455, %v442, 0.0
      %v458 = vsel %vm456, %v443, 0.0
      %vm459 = vcmask 64512
      %v460 = vsel %vm459, %v457, 0.0
      %v461 = vsel %vm459, %v458, 0.0
      %v462 = vadd.f32 %v460, %v461
      %v463 = vrot.slane %v462, 4
      %v464 = vadd.f32 %v462, %v463
      %v465 = vrot.slane %v464, 2
      %v466 = vadd.f32 %v464, %v465
      %v467 = vrot.slane %v466, 1
      %v468 = vadd.f32 %v466, %v467
      %v469 = vmul.f32 %v457, %v457
      %v470 = vmul.f32 %v458, %v458
      %v471 = vsel %vm459, %v469, 0.0
      %v472 = vsel %vm459, %v470, 0.0
      %v473 = vadd.f32 %v471, %v472
      %v474 = vrot.slane %v473, 4
      %v475 = vadd.f32 %v473, %v474
      %v476 = vrot.slane %v475, 2
      %v477 = vadd.f32 %v475, %v476
      %v478 = vrot.slane %v477, 1
      %v479 = vadd.f32 %v477, %v478
      %vm480 = vcmask 1040384
      %v481 = vsel %vm480, %v468, %v479
      %vm482 = vcmask 58368
      %483 = vst.msk [vmem:[%s164] sm:$0x3] %vm482, %v481
      %s484 = sadd.s32 %s17, %s18
      %p485 = scmp.lt.s32.totalorder %s484, 1
      %s486 = scalar_select %p485, %s484, 1
      %s487 = smul.addr %s486, 2
      %s488 = scalar_lea.vmem %s2, %s487
      // Predicated region
      $region29: #{conv_pre_wav_block.3} parent=27 // pred_check
        %p489 = pneg %p94
      $region30: #{conv_pre_wav_block.3} parent=27 // pred_check_branch
        %491 = sbr.rel (%p489) target = $region32
      $region31: #{conv_pre_wav_block.3} parent=27 // pred_region
        %s492 = sadd.s32 %s17, %s18
      $region32: #{conv_pre_wav_block.3} parent=27 // pred_fallthru
        _
    $region28: #{conv_pre_wav_block.3} parent=5 // pred_fallthru
      _
    %p493 = scmp.le.s32.totalorder 2, %s8
    // Predicated region
    $region33: #{conv_pre_wav_block.3} parent=5 // pred_check
      %p494 = pneg %p493
    $region34: #{conv_pre_wav_block.3} parent=5 // pred_check_branch
      %496 = sbr.rel (%p494) target = $region36
    $region35: #{conv_pre_wav_block.3} parent=5 // pred_region
      %s497 = ssub.s32 %s8, 2
      // Predicated region
      $region37: #{conv_pre_wav_block.3} parent=35 // pred_check
        %p498 = pneg %p100
      $region38: #{conv_pre_wav_block.3} parent=35 // pred_check_branch
        %500 = sbr.rel (%p498) target = $region40
      $region39: #{conv_pre_wav_block.3} parent=35 // pred_region
        %s501 = sadd.s32 %s19, %s20
        %p502 = scmp.lt.s32.totalorder %s501, 1
        %s503 = scalar_select %p502, %s501, 1
        %s504 = smul.addr %s503, 2
        %s505 = scalar_lea.vmem %s2, %s504
      $region40: #{conv_pre_wav_block.3} parent=35 // pred_fallthru
        _
    $region36: #{conv_pre_wav_block.3} parent=5 // pred_fallthru
      _
  $region6: #{conv_pre_wav_block.3} parent=0 // loop_footer
    %s12 = sadd.s32 1, %s8
  $region7: #{conv_pre_wav_block.3} parent=0 // loop_footer_branch
    %7 = sbr.rel target = $region3
  $region8: #{conv_pre_wav_block.3} parent=0 // loop_exit
    _

// kernel: conv_pre_wav_block.5
$region0: #{conv_pre_wav_block.5}
  #allocation0 [shape = 'u32[]', space=smem, size = 0x4, offset = 0x4, fixed_abs, tag = 'smem constant byte address 0x4 - core index']
  #allocation1 [shape = 'u32[144,128]{1,0:T(1,128)}', space=vmem, size = 0x12000, scoped, tag = 'internal scratch']
  #allocation2 [shape = 'f32[24,8]{1,0:T(8,128)}', space=vmem, size = 0x3000, scoped, tag = 'scratch operand']
  #allocation3 [shape = 's32[1]{0:T(128)S(6)}', space=smem, size = 0x200, scoped, tag = 'scoped memory for conv_pre_wav_block.5']
  #allocation4 [shape = 's32[1]{0:T(128)S(6)}', space=smem, size = 0x200, scoped, tag = 'scoped memory for conv_pre_wav_block.5']
  %s0 = inlined_call_operand.vmem [shape: f32[2,16,8], index: 0, kind: input, shape index: {}]
  %s1 = inlined_call_operand.vmem [shape: f32[1,8], index: 1, kind: input, shape index: {}]
  %s2 = inlined_call_operand.vmem [shape: f32[1,8], index: 2, kind: input, shape index: {}]
  %s3 = inlined_call_operand.vmem [shape: s32[632], index: 3, kind: input, shape index: {}]
  %s4 = inlined_call_operand.vmem [shape: s32[632], index: 4, kind: input, shape index: {}]
  %s5 = inlined_call_operand.<no memory space> [shape: s32[1], index: 5, kind: input, shape index: {}]
  %s6 = inlined_call_operand.<no memory space> [shape: s32[1], index: 6, kind: input, shape index: {}]
  %s7 = inlined_call_operand.vmem [shape: f32[2,632,8], index: 7, kind: output, shape index: {}]
  %s8 = sld [smem:[#allocation0]]
  $region80: #{conv_pre_wav_block.5} parent=0
    _
  %s10 = ssub.s32 1, %s8
  %s11 = scalar_select 0, %s10, %s8
  %12 = sst [smem:[#allocation3]] %s5
  %13 = sst [smem:[#allocation4]] %s6
  $region1: #{conv_pre_wav_block.5} parent=0
    #allocation5 [shape = 'u8[2560]{0}', space=smem, size = 0xa00, scoped, tag = 'input window, operand 3, single buffered']
    #allocation6 [shape = 's32[2]{0}', space=sflag, size = 0x8, scoped, tag = 'scoped memory for conv_pre_wav_block.5']
    #allocation7 [shape = 'u8[2560]{0}', space=smem, size = 0xa00, scoped, tag = 'input window, operand 4, single buffered']
    #allocation8 [shape = 's32[1]{0}', space=sflag, size = 0x4, scoped, tag = 'scoped memory for conv_pre_wav_block.5']
    %14 = vsyncpa [#allocation6], 0
    %15 = vsyncpa [#allocation8], 0
    loop: start=0, step=1, limit=4
    $region2: #{conv_pre_wav_block.5} parent=1 // loop_pre_header
      _
    $region3: #{conv_pre_wav_block.5} parent=1 // loop_header
      %s17 = sphi 0, %s21
      %p18 = scmp.ge.s32.totalorder %s17, 4
      %s24 = sphi 0, %s36
      %s25 = sphi 0, %s32
      %s26 = sphi 0, %s24
      %s27 = sphi 0, %s25
      %s28 = sphi 0, %s26
      %s29 = sphi 0, %s27
      %s41 = sphi 0, %s43
      %s44 = sphi 0, %s41
      %s45 = sphi 0, %s44
      %s61 = sphi 0, %s45
      %s65 = sphi 0, %s65
      %s67 = sphi 0, %s65
      %s68 = sphi 0, %s67
      %s82 = sphi 0, %s68
      %s86 = sphi 0, %s86
      %s88 = sphi 0, %s86
      %s89 = sphi 0, %s88
      %s103 = sphi 0, %s89
      %s107 = sphi 0, %s107
      %s109 = sphi 0, %s107
      %s110 = sphi 0, %s109
      %s124 = sphi 0, %s110
      %s128 = sphi 0, %s128
      %s130 = sphi 0, %s128
      %s131 = sphi 0, %s130
      %s145 = sphi 0, %s131
      %s149 = sphi 0, %s149
      %s151 = sphi 0, %s149
      %s152 = sphi 0, %s151
      %s166 = sphi 0, %s152
      %s170 = sphi 0, %s170
      %s172 = sphi 0, %s170
      %s173 = sphi 0, %s172
      %s187 = sphi 0, %s173
      %s193 = sphi 0, %s195
      %s196 = sphi 0, %s193
      %s197 = sphi 0, %s196
      %s213 = sphi 0, %s197
    $region4: #{conv_pre_wav_block.5} parent=1 // loop_header_branch
      %20 = sbr.rel (%p18) target = $region8
    $region5: #{conv_pre_wav_block.5} parent=1 // loop_body
      %s22 = ssub.s32 %s17, 1
      %s23 = ssub.s32 %s17, 2
      %s30 = sadd.s32 1, %s25
      %p31 = scmp.ge.s32.totalorder %s30, 1
      %s32 = scalar_select %p31, 0, %s30
      %s33 = sadd.s32 1, %s24
      %s34 = scalar_select %p31, %s33, %s24
      %p35 = scmp.ge.s32.totalorder %s34, 2
      %s36 = scalar_select %p35, 0, %s34
      %s37 = ssub.s32 %s24, %s36
      %s38 = ssub.s32 %s25, %s32
      %s39 = sor.u32 %s37, %s38
      %p40 = scmp.eq.s32.totalorder %s39, 0
      %s42 = sadd.s32 %s41, 1
      %s43 = scalar_select %p40, %s41, %s42
      %p46 = pneg %p40
      %p47 = scmp.eq.s32.totalorder %s17, 1
      %p48 = por %p46, %p47
      %p49 = scmp.ne.s32.totalorder %s41, %s44
      %p50 = scmp.eq.s32.totalorder %s17, 0
      %p51 = por %p49, %p50
      %p52 = scmp.ne.s32.totalorder %s41, %s44
      %p53 = scmp.eq.s32.totalorder %s22, 1
      %p54 = por %p52, %p53
      %p55 = scmp.ne.s32.totalorder %s44, %s45
      %p56 = scmp.eq.s32.totalorder %s22, 0
      %p57 = por %p55, %p56
      %p58 = scmp.ne.s32.totalorder %s44, %s45
      %p59 = scmp.eq.s32.totalorder %s23, 1
      %p60 = por %p58, %p59
      %p62 = scmp.ne.s32.totalorder %s45, %s61
      %p63 = scmp.eq.s32.totalorder %s23, 0
      %p64 = por %p62, %p63
      %s66 = sadd.s32 %s65, 1
      %p69 = scmp.eq.s32.totalorder %s17, 1
      %p70 = scmp.ne.s32.totalorder %s65, %s67
      %p71 = scmp.eq.s32.totalorder %s17, 0
      %p72 = por %p70, %p71
      %p73 = scmp.ne.s32.totalorder %s65, %s67
      %p74 = scmp.eq.s32.totalorder %s22, 1
      %p75 = por %p73, %p74
      %p76 = scmp.ne.s32.totalorder %s67, %s68
      %p77 = scmp.eq.s32.totalorder %s22, 0
      %p78 = por %p76, %p77
      %p79 = scmp.ne.s32.totalorder %s67, %s68
      %p80 = scmp.eq.s32.totalorder %s23, 1
      %p81 = por %p79, %p80
      %p83 = scmp.ne.s32.totalorder %s68, %s82
      %p84 = scmp.eq.s32.totalorder %s23, 0
      %p85 = por %p83, %p84
      %s87 = sadd.s32 %s86, 1
      %p90 = scmp.eq.s32.totalorder %s17, 1
      %p91 = scmp.ne.s32.totalorder %s86, %s88
      %p92 = scmp.eq.s32.totalorder %s17, 0
      %p93 = por %p91, %p92
      %p94 = scmp.ne.s32.totalorder %s86, %s88
      %p95 = scmp.eq.s32.totalorder %s22, 1
      %p96 = por %p94, %p95
      %p97 = scmp.ne.s32.totalorder %s88, %s89
      %p98 = scmp.eq.s32.totalorder %s22, 0
      %p99 = por %p97, %p98
      %p100 = scmp.ne.s32.totalorder %s88, %s89
      %p101 = scmp.eq.s32.totalorder %s23, 1
      %p102 = por %p100, %p101
      %p104 = scmp.ne.s32.totalorder %s89, %s103
      %p105 = scmp.eq.s32.totalorder %s23, 0
      %p106 = por %p104, %p105
      %s108 = sadd.s32 %s107, 1
      %p111 = scmp.eq.s32.totalorder %s17, 1
      %p112 = scmp.ne.s32.totalorder %s107, %s109
      %p113 = scmp.eq.s32.totalorder %s17, 0
      %p114 = por %p112, %p113
      %p115 = scmp.ne.s32.totalorder %s107, %s109
      %p116 = scmp.eq.s32.totalorder %s22, 1
      %p117 = por %p115, %p116
      %p118 = scmp.ne.s32.totalorder %s109, %s110
      %p119 = scmp.eq.s32.totalorder %s22, 0
      %p120 = por %p118, %p119
      %p121 = scmp.ne.s32.totalorder %s109, %s110
      %p122 = scmp.eq.s32.totalorder %s23, 1
      %p123 = por %p121, %p122
      %p125 = scmp.ne.s32.totalorder %s110, %s124
      %p126 = scmp.eq.s32.totalorder %s23, 0
      %p127 = por %p125, %p126
      %s129 = sadd.s32 %s128, 1
      %p132 = scmp.eq.s32.totalorder %s17, 1
      %p133 = scmp.ne.s32.totalorder %s128, %s130
      %p134 = scmp.eq.s32.totalorder %s17, 0
      %p135 = por %p133, %p134
      %p136 = scmp.ne.s32.totalorder %s128, %s130
      %p137 = scmp.eq.s32.totalorder %s22, 1
      %p138 = por %p136, %p137
      %p139 = scmp.ne.s32.totalorder %s130, %s131
      %p140 = scmp.eq.s32.totalorder %s22, 0
      %p141 = por %p139, %p140
      %p142 = scmp.ne.s32.totalorder %s130, %s131
      %p143 = scmp.eq.s32.totalorder %s23, 1
      %p144 = por %p142, %p143
      %p146 = scmp.ne.s32.totalorder %s131, %s145
      %p147 = scmp.eq.s32.totalorder %s23, 0
      %p148 = por %p146, %p147
      %s150 = sadd.s32 %s149, 1
      %p153 = scmp.eq.s32.totalorder %s17, 1
      %p154 = scmp.ne.s32.totalorder %s149, %s151
      %p155 = scmp.eq.s32.totalorder %s17, 0
      %p156 = por %p154, %p155
      %p157 = scmp.ne.s32.totalorder %s149, %s151
      %p158 = scmp.eq.s32.totalorder %s22, 1
      %p159 = por %p157, %p158
      %p160 = scmp.ne.s32.totalorder %s151, %s152
      %p161 = scmp.eq.s32.totalorder %s22, 0
      %p162 = por %p160, %p161
      %p163 = scmp.ne.s32.totalorder %s151, %s152
      %p164 = scmp.eq.s32.totalorder %s23, 1
      %p165 = por %p163, %p164
      %p167 = scmp.ne.s32.totalorder %s152, %s166
      %p168 = scmp.eq.s32.totalorder %s23, 0
      %p169 = por %p167, %p168
      %s171 = sadd.s32 %s170, 1
      %p174 = scmp.eq.s32.totalorder %s17, 1
      %p175 = scmp.ne.s32.totalorder %s170, %s172
      %p176 = scmp.eq.s32.totalorder %s17, 0
      %p177 = por %p175, %p176
      %p178 = scmp.ne.s32.totalorder %s170, %s172
      %p179 = scmp.eq.s32.totalorder %s22, 1
      %p180 = por %p178, %p179
      %p181 = scmp.ne.s32.totalorder %s172, %s173
      %p182 = scmp.eq.s32.totalorder %s22, 0
      %p183 = por %p181, %p182
      %p184 = scmp.ne.s32.totalorder %s172, %s173
      %p185 = scmp.eq.s32.totalorder %s23, 1
      %p186 = por %p184, %p185
      %p188 = scmp.ne.s32.totalorder %s173, %s187
      %p189 = scmp.eq.s32.totalorder %s23, 0
      %p190 = por %p188, %p189
      %s191 = ssub.s32 %s24, %s36
      %p192 = scmp.eq.s32.totalorder %s191, 0
      %s194 = sadd.s32 %s193, 1
      %s195 = scalar_select %p192, %s193, %s194
      %p198 = pneg %p192
      %p199 = scmp.eq.s32.totalorder %s17, 1
      %p200 = por %p198, %p199
      %p201 = scmp.ne.s32.totalorder %s193, %s196
      %p202 = scmp.eq.s32.totalorder %s17, 0
      %p203 = por %p201, %p202
      %p204 = scmp.ne.s32.totalorder %s193, %s196
      %p205 = scmp.eq.s32.totalorder %s22, 1
      %p206 = por %p204, %p205
      %p207 = scmp.ne.s32.totalorder %s196, %s197
      %p208 = scmp.eq.s32.totalorder %s22, 0
      %p209 = por %p207, %p208
      %p210 = scmp.ne.s32.totalorder %s196, %s197
      %p211 = scmp.eq.s32.totalorder %s23, 1
      %p212 = por %p210, %p211
      %p214 = scmp.ne.s32.totalorder %s197, %s213
      %p215 = scmp.eq.s32.totalorder %s23, 0
      %p216 = por %p214, %p215
      %p217 = scmp.le.s32.totalorder 1, %s17
      %p218 = scmp.lt.s32.totalorder %s17, 3
      %p219 = pnand %p217, %p218
      %p220 = pneg %p219
      // Predicated region
      $region9: #{conv_pre_wav_block.5} parent=5 // pred_check
        _
      $region10: #{conv_pre_wav_block.5} parent=5 // pred_check_branch
        %222 = sbr.rel (%p219) target = $region12
      $region11: #{conv_pre_wav_block.5} parent=5 // pred_region
        %s223 = ssub.s32 %s17, 1
        // Predicated region
        $region13: #{conv_pre_wav_block.5} parent=11 // pred_check
          %p224 = pneg %p78
        $region14: #{conv_pre_wav_block.5} parent=11 // pred_check_branch
          %226 = sbr.rel (%p224) target = $region16
        $region15: #{conv_pre_wav_block.5} parent=11 // pred_region
          _
        $region16: #{conv_pre_wav_block.5} parent=11 // pred_fallthru
          _
        // Predicated region
        $region17: #{conv_pre_wav_block.5} parent=11 // pred_check
          %p227 = pneg %p99
        $region18: #{conv_pre_wav_block.5} parent=11 // pred_check_branch
          %229 = sbr.rel (%p227) target = $region20
        $region19: #{conv_pre_wav_block.5} parent=11 // pred_region
          _
        $region20: #{conv_pre_wav_block.5} parent=11 // pred_fallthru
          _
        // Predicated region
        $region21: #{conv_pre_wav_block.5} parent=11 // pred_check
          %p230 = pneg %p120
        $region22: #{conv_pre_wav_block.5} parent=11 // pred_check_branch
          %232 = sbr.rel (%p230) target = $region24
        $region23: #{conv_pre_wav_block.5} parent=11 // pred_region
          %s234 = ssub.s32 80, 80
          %235 = vsyncadd [#allocation6], %s234
          %s237 = sshll.u32 %s3, 4
          %s238 = int_to_ptr.vmem [resolvable:$true] %s237
          %240 = dma.vmem_to_smem %s238, 80, [#allocation5], [#allocation6]
        $region24: #{conv_pre_wav_block.5} parent=11 // pred_fallthru
          _
        // Predicated region
        $region25: #{conv_pre_wav_block.5} parent=11 // pred_check
          %p241 = pneg %p141
        $region26: #{conv_pre_wav_block.5} parent=11 // pred_check_branch
          %243 = sbr.rel (%p241) target = $region28
        $region27: #{conv_pre_wav_block.5} parent=11 // pred_region
          %s245 = ssub.s32 80, 80
          %246 = vsyncadd [#allocation8], %s245
          %s248 = sshll.u32 %s4, 4
          %s249 = int_to_ptr.vmem [resolvable:$true] %s248
          %251 = dma.vmem_to_smem %s249, 80, [#allocation7], [#allocation8]
        $region28: #{conv_pre_wav_block.5} parent=11 // pred_fallthru
          _
        // Predicated region
        $region29: #{conv_pre_wav_block.5} parent=11 // pred_check
          %p252 = pneg %p162
        $region30: #{conv_pre_wav_block.5} parent=11 // pred_check_branch
          %254 = sbr.rel (%p252) target = $region32
        $region31: #{conv_pre_wav_block.5} parent=11 // pred_region
          _
        $region32: #{conv_pre_wav_block.5} parent=11 // pred_fallthru
          _
        // Predicated region
        $region33: #{conv_pre_wav_block.5} parent=11 // pred_check
          %p255 = pneg %p183
        $region34: #{conv_pre_wav_block.5} parent=11 // pred_check_branch
          %257 = sbr.rel (%p255) target = $region36
        $region35: #{conv_pre_wav_block.5} parent=11 // pred_region
          _
        $region36: #{conv_pre_wav_block.5} parent=11 // pred_fallthru
          _
      $region12: #{conv_pre_wav_block.5} parent=5 // pred_fallthru
        _
      %p258 = scmp.lt.s32.totalorder %s17, 2
      // Predicated region
      $region37: #{conv_pre_wav_block.5} parent=5 // pred_check
        %p259 = pneg %p258
      $region38: #{conv_pre_wav_block.5} parent=5 // pred_check_branch
        %261 = sbr.rel (%p259) target = $region40
      $region39: #{conv_pre_wav_block.5} parent=5 // pred_region
        // Predicated region
        $region41: #{conv_pre_wav_block.5} parent=39 // pred_check
          %p262 = pneg %p51
        $region42: #{conv_pre_wav_block.5} parent=39 // pred_check_branch
          %264 = sbr.rel (%p262) target = $region44
        $region43: #{conv_pre_wav_block.5} parent=39 // pred_region
          %s265 = smul.u32 2, %s25
          %p266 = scmp.lt.s32.totalorder %s24, 1
          %s267 = scalar_select %p266, %s24, 1
          %p268 = scmp.lt.s32.totalorder %s265, 1
          %s269 = scalar_select %p268, %s265, 1
          %s270 = smul.addr %s267, 2
          %s271 = sadd.s32 %s269, %s270
          %s272 = smul.addr %s271, 8
          %s273 = scalar_lea.vmem %s0, %s272
          %s274 = smul.u32 2, %s25
        $region44: #{conv_pre_wav_block.5} parent=39 // pred_fallthru
          _
      $region40: #{conv_pre_wav_block.5} parent=5 // pred_fallthru
        _
      %p275 = scmp.le.s32.totalorder 1, %s17
      %p276 = scmp.lt.s32.totalorder %s17, 3
      %p277 = pnand %p275, %p276
      %p278 = pneg %p277
      // Predicated region
      $region45: #{conv_pre_wav_block.5} parent=5 // pred_check
        _
      $region46: #{conv_pre_wav_block.5} parent=5 // pred_check_branch
        %280 = sbr.rel (%p277) target = $region48
      $region47: #{conv_pre_wav_block.5} parent=5 // pred_region
        %s281 = ssub.s32 %s17, 1
        // Predicated region
        $region49: #{conv_pre_wav_block.5} parent=47 // pred_check
          %p282 = pneg %p120
        $region50: #{conv_pre_wav_block.5} parent=47 // pred_check_branch
          %284 = sbr.rel (%p282) target = $region52
        $region51: #{conv_pre_wav_block.5} parent=47 // pred_region
          %285 = dma.done [#allocation6], 80
        $region52: #{conv_pre_wav_block.5} parent=47 // pred_fallthru
          _
        // Predicated region
        $region53: #{conv_pre_wav_block.5} parent=47 // pred_check
          %p286 = pneg %p141
        $region54: #{conv_pre_wav_block.5} parent=47 // pred_check_branch
          %288 = sbr.rel (%p286) target = $region56
        $region55: #{conv_pre_wav_block.5} parent=47 // pred_region
          %289 = dma.done [#allocation8], 80
        $region56: #{conv_pre_wav_block.5} parent=47 // pred_fallthru
          _
        %290 = sfence
        %s291 = smul.u32 2, %s27
        %p292 = scmp.lt.s32.totalorder %s26, 1
        %s293 = scalar_select %p292, %s26, 1
        %p294 = scmp.lt.s32.totalorder %s291, 1
        %s295 = scalar_select %p294, %s291, 1
        %s296 = smul.addr %s293, 2
        %s297 = sadd.s32 %s295, %s296
        %s298 = smul.addr %s297, 8
        %s299 = scalar_lea.vmem %s0, %s298
        %p300 = pneg %p57
        %p301 = pneg %p54
        %p302 = pneg %p78
        %p303 = pneg %p75
        %p304 = pneg %p99
        %p305 = pneg %p96
        %p306 = pneg %p120
        %p307 = pneg %p117
        %p308 = pneg %p141
        %p309 = pneg %p138
        %p310 = pneg %p162
        %p311 = pneg %p159
        %p312 = pneg %p183
        %p313 = pneg %p180
        %p314 = pneg %p209
        %p315 = pneg %p206
        %p316 = scmp.lt.s32.totalorder %s26, 1
        %s317 = scalar_select %p316, %s26, 1
        %s318 = smul.addr %s317, 79
        %s319 = smul.addr %s318, 8
        %s320 = scalar_lea.vmem %s7, %s319
        %s321 = smul.u32 2, %s27
        %p322 = scmp.lt.s32.totalorder %s26, 1
        %s323 = scalar_select %p322, %s26, 1
        %p324 = scmp.lt.s32.totalorder %s321, 1
        %s325 = scalar_select %p324, %s321, 1
        %s326 = smul.addr %s323, 2
        %s327 = sadd.s32 %s325, %s326
        %s328 = smul.addr %s327, 8
        %s329 = scalar_lea.vmem %s0, %s328
        %s330 = smul.u32 2, %s27
        %p331 = scmp.lt.s32.totalorder %s26, 1
        %s332 = scalar_select %p331, %s26, 1
        %s333 = smul.addr %s332, 79
        %s334 = smul.addr %s333, 8
        %s335 = scalar_lea.vmem %s7, %s334
        %p336 = scmp.eq.s32.totalorder %s27, 0
        // Predicated region
        $region57: #{conv_pre_wav_block.5} parent=47 // pred_check
          %p337 = pneg %p336
        $region58: #{conv_pre_wav_block.5} parent=47 // pred_check_branch
          %339 = sbr.rel (%p337) target = $region60
        $region59: #{conv_pre_wav_block.5} parent=47 // pred_region
          %vm340 = vcmask 64512
          %341 = vst.msk [vmem:[%s335] sm:$0xff] %vm340, 0.0
          %342 = vst.msk [vmem:[%s335 + $0x8] sm:$0xff] %vm340, 0.0
          %343 = vst.msk [vmem:[%s335 + $0x10] sm:$0xff] %vm340, 0.0
          %344 = vst.msk [vmem:[%s335 + $0x18] sm:$0xff] %vm340, 0.0
          %345 = vst.msk [vmem:[%s335 + $0x20] sm:$0xff] %vm340, 0.0
          %346 = vst.msk [vmem:[%s335 + $0x28] sm:$0xff] %vm340, 0.0
          %347 = vst.msk [vmem:[%s335 + $0x30] sm:$0xff] %vm340, 0.0
          %348 = vst.msk [vmem:[%s335 + $0x38] sm:$0xff] %vm340, 0.0
          %349 = vst.msk [vmem:[%s335 + $0x40] sm:$0xff] %vm340, 0.0
          %350 = vst.msk [vmem:[%s335 + $0x48] sm:$0xff] %vm340, 0.0
          %351 = vst.msk [vmem:[%s335 + $0x50] sm:$0xff] %vm340, 0.0
          %352 = vst.msk [vmem:[%s335 + $0x58] sm:$0xff] %vm340, 0.0
          %353 = vst.msk [vmem:[%s335 + $0x60] sm:$0xff] %vm340, 0.0
          %354 = vst.msk [vmem:[%s335 + $0x68] sm:$0xff] %vm340, 0.0
          %355 = vst.msk [vmem:[%s335 + $0x70] sm:$0xff] %vm340, 0.0
          %356 = vst.msk [vmem:[%s335 + $0x78] sm:$0xff] %vm340, 0.0
          %357 = vst.msk [vmem:[%s335 + $0x80] sm:$0xff] %vm340, 0.0
          %358 = vst.msk [vmem:[%s335 + $0x88] sm:$0xff] %vm340, 0.0
          %359 = vst.msk [vmem:[%s335 + $0x90] sm:$0xff] %vm340, 0.0
          %360 = vst.msk [vmem:[%s335 + $0x98] sm:$0xff] %vm340, 0.0
          %361 = vst.msk [vmem:[%s335 + $0xa0] sm:$0xff] %vm340, 0.0
          %362 = vst.msk [vmem:[%s335 + $0xa8] sm:$0xff] %vm340, 0.0
          %363 = vst.msk [vmem:[%s335 + $0xb0] sm:$0xff] %vm340, 0.0
          %364 = vst.msk [vmem:[%s335 + $0xb8] sm:$0xff] %vm340, 0.0
          %365 = vst.msk [vmem:[%s335 + $0xc0] sm:$0xff] %vm340, 0.0
          %366 = vst.msk [vmem:[%s335 + $0xc8] sm:$0xff] %vm340, 0.0
          %367 = vst.msk [vmem:[%s335 + $0xd0] sm:$0xff] %vm340, 0.0
          %368 = vst.msk [vmem:[%s335 + $0xd8] sm:$0xff] %vm340, 0.0
          %369 = vst.msk [vmem:[%s335 + $0xe0] sm:$0xff] %vm340, 0.0
          %370 = vst.msk [vmem:[%s335 + $0xe8] sm:$0xff] %vm340, 0.0
          %371 = vst.msk [vmem:[%s335 + $0xf0] sm:$0xff] %vm340, 0.0
          %372 = vst.msk [vmem:[%s335 + $0xf8] sm:$0xff] %vm340, 0.0
          %373 = vst.msk [vmem:[%s335 + $0x100] sm:$0xff] %vm340, 0.0
          %374 = vst.msk [vmem:[%s335 + $0x108] sm:$0xff] %vm340, 0.0
          %375 = vst.msk [vmem:[%s335 + $0x110] sm:$0xff] %vm340, 0.0
          %376 = vst.msk [vmem:[%s335 + $0x118] sm:$0xff] %vm340, 0.0
          %377 = vst.msk [vmem:[%s335 + $0x120] sm:$0xff] %vm340, 0.0
          %378 = vst.msk [vmem:[%s335 + $0x128] sm:$0xff] %vm340, 0.0
          %379 = vst.msk [vmem:[%s335 + $0x130] sm:$0xff] %vm340, 0.0
          %380 = vst.msk [vmem:[%s335 + $0x138] sm:$0xff] %vm340, 0.0
          %381 = vst.msk [vmem:[%s335 + $0x140] sm:$0xff] %vm340, 0.0
          %382 = vst.msk [vmem:[%s335 + $0x148] sm:$0xff] %vm340, 0.0
          %383 = vst.msk [vmem:[%s335 + $0x150] sm:$0xff] %vm340, 0.0
          %384 = vst.msk [vmem:[%s335 + $0x158] sm:$0xff] %vm340, 0.0
          %385 = vst.msk [vmem:[%s335 + $0x160] sm:$0xff] %vm340, 0.0
          %386 = vst.msk [vmem:[%s335 + $0x168] sm:$0xff] %vm340, 0.0
          %387 = vst.msk [vmem:[%s335 + $0x170] sm:$0xff] %vm340, 0.0
          %388 = vst.msk [vmem:[%s335 + $0x178] sm:$0xff] %vm340, 0.0
          %389 = vst.msk [vmem:[%s335 + $0x180] sm:$0xff] %vm340, 0.0
          %390 = vst.msk [vmem:[%s335 + $0x188] sm:$0xff] %vm340, 0.0
          %391 = vst.msk [vmem:[%s335 + $0x190] sm:$0xff] %vm340, 0.0
          %392 = vst.msk [vmem:[%s335 + $0x198] sm:$0xff] %vm340, 0.0
          %393 = vst.msk [vmem:[%s335 + $0x1a0] sm:$0xff] %vm340, 0.0
          %394 = vst.msk [vmem:[%s335 + $0x1a8] sm:$0xff] %vm340, 0.0
          %395 = vst.msk [vmem:[%s335 + $0x1b0] sm:$0xff] %vm340, 0.0
          %396 = vst.msk [vmem:[%s335 + $0x1b8] sm:$0xff] %vm340, 0.0
          %397 = vst.msk [vmem:[%s335 + $0x1c0] sm:$0xff] %vm340, 0.0
          %398 = vst.msk [vmem:[%s335 + $0x1c8] sm:$0xff] %vm340, 0.0
          %399 = vst.msk [vmem:[%s335 + $0x1d0] sm:$0xff] %vm340, 0.0
          %400 = vst.msk [vmem:[%s335 + $0x1d8] sm:$0xff] %vm340, 0.0
          %401 = vst.msk [vmem:[%s335 + $0x1e0] sm:$0xff] %vm340, 0.0
          %402 = vst.msk [vmem:[%s335 + $0x1e8] sm:$0xff] %vm340, 0.0
          %403 = vst.msk [vmem:[%s335 + $0x1f0] sm:$0xff] %vm340, 0.0
          %404 = vst.msk [vmem:[%s335 + $0x1f8] sm:$0xff] %vm340, 0.0
          %405 = vst.msk [vmem:[%s335 + $0x200] sm:$0xff] %vm340, 0.0
          %406 = vst.msk [vmem:[%s335 + $0x208] sm:$0xff] %vm340, 0.0
          %407 = vst.msk [vmem:[%s335 + $0x210] sm:$0xff] %vm340, 0.0
          %408 = vst.msk [vmem:[%s335 + $0x218] sm:$0xff] %vm340, 0.0
          %409 = vst.msk [vmem:[%s335 + $0x220] sm:$0xff] %vm340, 0.0
          %410 = vst.msk [vmem:[%s335 + $0x228] sm:$0xff] %vm340, 0.0
          %411 = vst.msk [vmem:[%s335 + $0x230] sm:$0xff] %vm340, 0.0
          %412 = vst.msk [vmem:[%s335 + $0x238] sm:$0xff] %vm340, 0.0
          %413 = vst.msk [vmem:[%s335 + $0x240] sm:$0xff] %vm340, 0.0
          %414 = vst.msk [vmem:[%s335 + $0x248] sm:$0xff] %vm340, 0.0
          %415 = vst.msk [vmem:[%s335 + $0x250] sm:$0xff] %vm340, 0.0
          %416 = vst.msk [vmem:[%s335 + $0x258] sm:$0xff] %vm340, 0.0
          %417 = vst.msk [vmem:[%s335 + $0x260] sm:$0xff] %vm340, 0.0
          %418 = vst.msk [vmem:[%s335 + $0x268] sm:$0xff] %vm340, 0.0
          %419 = vst.msk [vmem:[%s335 + $0x270] sm:$0xff] %vm340, 0.0
        $region60: #{conv_pre_wav_block.5} parent=47 // pred_fallthru
          _
        %v420 = vld [vmem:[%s329] sm:$0xff]
        %v421 = vld [vmem:[%s329 + $0x8] sm:$0xff]
        %v422 = vld [vmem:[%s1] sm:$0x1]
        %v424 = vlaneseq
        %v425 = vshrl.u32 %v424, 7
        %v426 = vsub.s32 0, %v425
        %v427 = vrot.slane %v422, %v426
        %v429 = vmul.f32 %v420, %v427
        %v430 = vmul.f32 %v421, %v427
        %v431 = vld [vmem:[%s2] sm:$0x1]
        %v433 = vlaneseq
        %v434 = vshrl.u32 %v433, 7
        %v435 = vsub.s32 0, %v434
        %v436 = vrot.slane %v431, %v435
        %v438 = vadd.f32 %v429, %v436
        %v439 = vadd.f32 %v430, %v436
        %v440 = vmax.f32 %v438, 0.0
        %v441 = vmax.f32 %v439, 0.0
        %vm442 = vcmask 64512
        %443 = vst.msk [vmem:[#allocation2] sm:$0xff] %vm442, %v440
        %444 = vst.msk [vmem:[#allocation2 + $0x8] sm:$0xff] %vm442, %v441
        %445 = vst.msk [vmem:[#allocation2 + $0x10] sm:$0xff] %vm442, 0.0
        %s446 = smul.u32 %s27, 16
        %v447 = vlaneseq
        %v448 = vshrl.u32 %v447, 7
        %s449 = sld [smem:[#allocation3 + %s27]]
        %s450 = sld [smem:[#allocation4 + %s27]]
        // While loop
        $region61: #{conv_pre_wav_block.5} parent=47 // loop_pre_header
          _
        $region62: #{conv_pre_wav_block.5} parent=47 // loop_header
          %s452 = sphi 0, %s454
          %p453 = scmp.ge.s32.totalorder %s452, %s450
        $region63: #{conv_pre_wav_block.5} parent=47 // loop_header_branch
          %456 = sbr.rel (%p453) target = $region67
        $region64: #{conv_pre_wav_block.5} parent=47 // loop_body
          %s457 = sadd.s32 %s449, %s452
          %s458 = sld [smem:[#allocation5 + %s457]]
          %s459 = ssub.s32 %s458, %s446
          %p460 = scmp.gt.s32.totalorder %s459, 0
          %s461 = scalar_select %p460, %s459, 0
          %s462 = sld [smem:[#allocation7 + %s457]]
          %s463 = ssub.s32 %s462, %s446
          %p464 = scmp.lt.s32.totalorder %s463, 16
          %s465 = scalar_select %p464, %s463, 16
          %s466 = scalar_lea.vmem [#allocation2], %s461
          %v467 = vld [vmem:[%s466] sm:$0xff]
          %v468 = vstv %s461
          %v469 = vadd.s32 %v448, %v468
          %v470 = vstv %s465
          %vm471 = vcmp.lt.s32.totalorder %v469, %v470
          %v472 = vsel %vm471, 1, 0
          %vm473 = vcmp.eq.s32.totalorder %v472, 1
          %v474 = vsel %vm473, %v467, 0.0
          %v475 = vsel %vm442, %v474, -inf
          %v476 = vrot.slane %v475, 4
          %v477 = vmax.f32 %v475, %v476
          %v478 = vrot.slane %v477, 2
          %v479 = vmax.f32 %v477, %v478
          %v480 = vrot.slane %v479, 1
          %v481 = vmax.f32 %v479, %v480
          %s482 = scalar_lea.vmem %s335, %s457
          %v483 = vld [vmem:[%s482] sm:$0x1]
          %v484 = vmax.f32 %v483, %v481
          %vm485 = vcmask 57344
          %486 = vst.msk [vmem:[%s482] sm:$0x1] %vm485, %v484
        $region65: #{conv_pre_wav_block.5} parent=47 // loop_footer
          %s454 = sadd.s32 %s452, 1
        $region66: #{conv_pre_wav_block.5} parent=47 // loop_footer_branch
          %451 = sbr.rel target = $region62
        $region67: #{conv_pre_wav_block.5} parent=47 // loop_exit
          _
        %p487 = scmp.lt.s32.totalorder %s26, 1
        %s488 = scalar_select %p487, %s26, 1
        %s489 = smul.addr %s488, 79
        %s490 = smul.addr %s489, 8
        %s491 = scalar_lea.vmem %s7, %s490
        // Predicated region
        $region68: #{conv_pre_wav_block.5} parent=47 // pred_check
          %p492 = pneg %p206
        $region69: #{conv_pre_wav_block.5} parent=47 // pred_check_branch
          %494 = sbr.rel (%p492) target = $region71
        $region70: #{conv_pre_wav_block.5} parent=47 // pred_region
          _
        $region71: #{conv_pre_wav_block.5} parent=47 // pred_fallthru
          _
      $region48: #{conv_pre_wav_block.5} parent=5 // pred_fallthru
        _
      %p495 = scmp.le.s32.totalorder 2, %s17
      // Predicated region
      $region72: #{conv_pre_wav_block.5} parent=5 // pred_check
        %p496 = pneg %p495
      $region73: #{conv_pre_wav_block.5} parent=5 // pred_check_branch
        %498 = sbr.rel (%p496) target = $region75
      $region74: #{conv_pre_wav_block.5} parent=5 // pred_region
        %s499 = ssub.s32 %s17, 2
        // Predicated region
        $region76: #{conv_pre_wav_block.5} parent=74 // pred_check
          %p500 = pneg %p212
        $region77: #{conv_pre_wav_block.5} parent=74 // pred_check_branch
          %502 = sbr.rel (%p500) target = $region79
        $region78: #{conv_pre_wav_block.5} parent=74 // pred_region
          %p503 = scmp.lt.s32.totalorder %s28, 1
          %s504 = scalar_select %p503, %s28, 1
          %s505 = smul.addr %s504, 79
          %s506 = smul.addr %s505, 8
          %s507 = scalar_lea.vmem %s7, %s506
        $region79: #{conv_pre_wav_block.5} parent=74 // pred_fallthru
          _
      $region75: #{conv_pre_wav_block.5} parent=5 // pred_fallthru
        _
    $region6: #{conv_pre_wav_block.5} parent=1 // loop_footer
      %s21 = sadd.s32 1, %s17
    $region7: #{conv_pre_wav_block.5} parent=1 // loop_footer_branch
      %16 = sbr.rel target = $region3
    $region8: #{conv_pre_wav_block.5} parent=1 // loop_exit
      _
    %508 = vsyncpa [#allocation6], 1
    %s509 = scalar_lea.sflag [#allocation6], 1
    %510 = vsyncpa %s509, 1
    %511 = vsyncpa [#allocation8], 1

// kernel: conv_pre_wav_block.4
$region0: #{conv_pre_wav_block.4}
  #allocation0 [shape = 'u32[]', space=smem, size = 0x4, offset = 0x4, fixed_abs, tag = 'smem constant byte address 0x4 - core index']
  #allocation1 [shape = 'u32[144,128]{1,0:T(1,128)}', space=vmem, size = 0x12000, scoped, tag = 'internal scratch']
  %s0 = inlined_call_operand.vmem [shape: f32[2,22,4], index: 0, kind: input, shape index: {}]
  %s1 = inlined_call_operand.vmem [shape: f32[3,4,8], index: 1, kind: input, shape index: {}]
  %s2 = inlined_call_operand.vmem [shape: f32[3,8,8], index: 2, kind: input, shape index: {}]
  %s3 = inlined_call_operand.vmem [shape: f32[1,8], index: 3, kind: input, shape index: {}]
  %s4 = inlined_call_operand.vmem [shape: f32[1,8], index: 4, kind: input, shape index: {}]
  %s5 = inlined_call_operand.vmem [shape: f32[2,16,8], index: 5, kind: output, shape index: {0}]
  %s6 = inlined_call_operand.vmem [shape: f32[2,2,8], index: 6, kind: output, shape index: {1}]
  %7 = xla_tuple %s5, %s6
  %s8 = sld [smem:[#allocation0]]
  $region61: #{conv_pre_wav_block.4} parent=0
    _
  %s10 = ssub.s32 1, %s8
  %s11 = scalar_select 0, %s10, %s8
  loop: start=0, step=1, limit=4
  $region2: #{conv_pre_wav_block.4} parent=0 // loop_pre_header
    _
  $region3: #{conv_pre_wav_block.4} parent=0 // loop_header
    %s13 = sphi 0, %s17
    %p14 = scmp.ge.s32.totalorder %s13, 4
    %s20 = sphi 0, %s32
    %s21 = sphi 0, %s28
    %s22 = sphi 0, %s20
    %s23 = sphi 0, %s21
    %s24 = sphi 0, %s22
    %s25 = sphi 0, %s23
    %s37 = sphi 0, %s39
    %s40 = sphi 0, %s37
    %s41 = sphi 0, %s40
    %s57 = sphi 0, %s41
    %s61 = sphi 0, %s61
    %s63 = sphi 0, %s61
    %s64 = sphi 0, %s63
    %s78 = sphi 0, %s64
    %s82 = sphi 0, %s82
    %s84 = sphi 0, %s82
    %s85 = sphi 0, %s84
    %s99 = sphi 0, %s85
    %s103 = sphi 0, %s103
    %s105 = sphi 0, %s103
    %s106 = sphi 0, %s105
    %s120 = sphi 0, %s106
    %s124 = sphi 0, %s124
    %s126 = sphi 0, %s124
    %s127 = sphi 0, %s126
    %s141 = sphi 0, %s127
    %s149 = sphi 0, %s151
    %s152 = sphi 0, %s149
    %s153 = sphi 0, %s152
    %s169 = sphi 0, %s153
    %s177 = sphi 0, %s179
    %s180 = sphi 0, %s177
    %s181 = sphi 0, %s180
    %s197 = sphi 0, %s181
  $region4: #{conv_pre_wav_block.4} parent=0 // loop_header_branch
    %16 = sbr.rel (%p14) target = $region8
  $region5: #{conv_pre_wav_block.4} parent=0 // loop_body
    %s18 = ssub.s32 %s13, 1
    %s19 = ssub.s32 %s13, 2
    %s26 = sadd.s32 1, %s21
    %p27 = scmp.ge.s32.totalorder %s26, 1
    %s28 = scalar_select %p27, 0, %s26
    %s29 = sadd.s32 1, %s20
    %s30 = scalar_select %p27, %s29, %s20
    %p31 = scmp.ge.s32.totalorder %s30, 2
    %s32 = scalar_select %p31, 0, %s30
    %s33 = sadd.s32 %s20, %s21
    %s34 = sadd.s32 %s32, %s28
    %s35 = ssub.s32 %s33, %s34
    %p36 = scmp.eq.s32.totalorder %s35, 0
    %s38 = sadd.s32 %s37, 1
    %s39 = scalar_select %p36, %s37, %s38
    %p42 = pneg %p36
    %p43 = scmp.eq.s32.totalorder %s13, 1
    %p44 = por %p42, %p43
    %p45 = scmp.ne.s32.totalorder %s37, %s40
    %p46 = scmp.eq.s32.totalorder %s13, 0
    %p47 = por %p45, %p46
    %p48 = scmp.ne.s32.totalorder %s37, %s40
    %p49 = scmp.eq.s32.totalorder %s18, 1
    %p50 = por %p48, %p49
    %p51 = scmp.ne.s32.totalorder %s40, %s41
    %p52 = scmp.eq.s32.totalorder %s18, 0
    %p53 = por %p51, %p52
    %p54 = scmp.ne.s32.totalorder %s40, %s41
    %p55 = scmp.eq.s32.totalorder %s19, 1
    %p56 = por %p54, %p55
    %p58 = scmp.ne.s32.totalorder %s41, %s57
    %p59 = scmp.eq.s32.totalorder %s19, 0
    %p60 = por %p58, %p59
    %s62 = sadd.s32 %s61, 1
    %p65 = scmp.eq.s32.totalorder %s13, 1
    %p66 = scmp.ne.s32.totalorder %s61, %s63
    %p67 = scmp.eq.s32.totalorder %s13, 0
    %p68 = por %p66, %p67
    %p69 = scmp.ne.s32.totalorder %s61, %s63
    %p70 = scmp.eq.s32.totalorder %s18, 1
    %p71 = por %p69, %p70
    %p72 = scmp.ne.s32.totalorder %s63, %s64
    %p73 = scmp.eq.s32.totalorder %s18, 0
    %p74 = por %p72, %p73
    %p75 = scmp.ne.s32.totalorder %s63, %s64
    %p76 = scmp.eq.s32.totalorder %s19, 1
    %p77 = por %p75, %p76
    %p79 = scmp.ne.s32.totalorder %s64, %s78
    %p80 = scmp.eq.s32.totalorder %s19, 0
    %p81 = por %p79, %p80
    %s83 = sadd.s32 %s82, 1
    %p86 = scmp.eq.s32.totalorder %s13, 1
    %p87 = scmp.ne.s32.totalorder %s82, %s84
    %p88 = scmp.eq.s32.totalorder %s13, 0
    %p89 = por %p87, %p88
    %p90 = scmp.ne.s32.totalorder %s82, %s84
    %p91 = scmp.eq.s32.totalorder %s18, 1
    %p92 = por %p90, %p91
    %p93 = scmp.ne.s32.totalorder %s84, %s85
    %p94 = scmp.eq.s32.totalorder %s18, 0
    %p95 = por %p93, %p94
    %p96 = scmp.ne.s32.totalorder %s84, %s85
    %p97 = scmp.eq.s32.totalorder %s19, 1
    %p98 = por %p96, %p97
    %p100 = scmp.ne.s32.totalorder %s85, %s99
    %p101 = scmp.eq.s32.totalorder %s19, 0
    %p102 = por %p100, %p101
    %s104 = sadd.s32 %s103, 1
    %p107 = scmp.eq.s32.totalorder %s13, 1
    %p108 = scmp.ne.s32.totalorder %s103, %s105
    %p109 = scmp.eq.s32.totalorder %s13, 0
    %p110 = por %p108, %p109
    %p111 = scmp.ne.s32.totalorder %s103, %s105
    %p112 = scmp.eq.s32.totalorder %s18, 1
    %p113 = por %p111, %p112
    %p114 = scmp.ne.s32.totalorder %s105, %s106
    %p115 = scmp.eq.s32.totalorder %s18, 0
    %p116 = por %p114, %p115
    %p117 = scmp.ne.s32.totalorder %s105, %s106
    %p118 = scmp.eq.s32.totalorder %s19, 1
    %p119 = por %p117, %p118
    %p121 = scmp.ne.s32.totalorder %s106, %s120
    %p122 = scmp.eq.s32.totalorder %s19, 0
    %p123 = por %p121, %p122
    %s125 = sadd.s32 %s124, 1
    %p128 = scmp.eq.s32.totalorder %s13, 1
    %p129 = scmp.ne.s32.totalorder %s124, %s126
    %p130 = scmp.eq.s32.totalorder %s13, 0
    %p131 = por %p129, %p130
    %p132 = scmp.ne.s32.totalorder %s124, %s126
    %p133 = scmp.eq.s32.totalorder %s18, 1
    %p134 = por %p132, %p133
    %p135 = scmp.ne.s32.totalorder %s126, %s127
    %p136 = scmp.eq.s32.totalorder %s18, 0
    %p137 = por %p135, %p136
    %p138 = scmp.ne.s32.totalorder %s126, %s127
    %p139 = scmp.eq.s32.totalorder %s19, 1
    %p140 = por %p138, %p139
    %p142 = scmp.ne.s32.totalorder %s127, %s141
    %p143 = scmp.eq.s32.totalorder %s19, 0
    %p144 = por %p142, %p143
    %s145 = ssub.s32 %s20, %s32
    %s146 = ssub.s32 %s21, %s28
    %s147 = sor.u32 %s145, %s146
    %p148 = scmp.eq.s32.totalorder %s147, 0
    %s150 = sadd.s32 %s149, 1
    %s151 = scalar_select %p148, %s149, %s150
    %p154 = pneg %p148
    %p155 = scmp.eq.s32.totalorder %s13, 1
    %p156 = por %p154, %p155
    %p157 = scmp.ne.s32.totalorder %s149, %s152
    %p158 = scmp.eq.s32.totalorder %s13, 0
    %p159 = por %p157, %p158
    %p160 = scmp.ne.s32.totalorder %s149, %s152
    %p161 = scmp.eq.s32.totalorder %s18, 1
    %p162 = por %p160, %p161
    %p163 = scmp.ne.s32.totalorder %s152, %s153
    %p164 = scmp.eq.s32.totalorder %s18, 0
    %p165 = por %p163, %p164
    %p166 = scmp.ne.s32.totalorder %s152, %s153
    %p167 = scmp.eq.s32.totalorder %s19, 1
    %p168 = por %p166, %p167
    %p170 = scmp.ne.s32.totalorder %s153, %s169
    %p171 = scmp.eq.s32.totalorder %s19, 0
    %p172 = por %p170, %p171
    %s173 = sadd.s32 %s20, %s21
    %s174 = sadd.s32 %s32, %s28
    %s175 = ssub.s32 %s173, %s174
    %p176 = scmp.eq.s32.totalorder %s175, 0
    %s178 = sadd.s32 %s177, 1
    %s179 = scalar_select %p176, %s177, %s178
    %p182 = pneg %p176
    %p183 = scmp.eq.s32.totalorder %s13, 1
    %p184 = por %p182, %p183
    %p185 = scmp.ne.s32.totalorder %s177, %s180
    %p186 = scmp.eq.s32.totalorder %s13, 0
    %p187 = por %p185, %p186
    %p188 = scmp.ne.s32.totalorder %s177, %s180
    %p189 = scmp.eq.s32.totalorder %s18, 1
    %p190 = por %p188, %p189
    %p191 = scmp.ne.s32.totalorder %s180, %s181
    %p192 = scmp.eq.s32.totalorder %s18, 0
    %p193 = por %p191, %p192
    %p194 = scmp.ne.s32.totalorder %s180, %s181
    %p195 = scmp.eq.s32.totalorder %s19, 1
    %p196 = por %p194, %p195
    %p198 = scmp.ne.s32.totalorder %s181, %s197
    %p199 = scmp.eq.s32.totalorder %s19, 0
    %p200 = por %p198, %p199
    %p201 = scmp.le.s32.totalorder 1, %s13
    %p202 = scmp.lt.s32.totalorder %s13, 3
    %p203 = pnand %p201, %p202
    %p204 = pneg %p203
    // Predicated region
    $region9: #{conv_pre_wav_block.4} parent=5 // pred_check
      _
    $region10: #{conv_pre_wav_block.4} parent=5 // pred_check_branch
      %206 = sbr.rel (%p203) target = $region12
    $region11: #{conv_pre_wav_block.4} parent=5 // pred_region
      %s207 = ssub.s32 %s13, 1
      // Predicated region
      $region13: #{conv_pre_wav_block.4} parent=11 // pred_check
        %p208 = pneg %p74
      $region14: #{conv_pre_wav_block.4} parent=11 // pred_check_branch
        %210 = sbr.rel (%p208) target = $region16
      $region15: #{conv_pre_wav_block.4} parent=11 // pred_region
        _
      $region16: #{conv_pre_wav_block.4} parent=11 // pred_fallthru
        _
      // Predicated region
      $region17: #{conv_pre_wav_block.4} parent=11 // pred_check
        %p211 = pneg %p95
      $region18: #{conv_pre_wav_block.4} parent=11 // pred_check_branch
        %213 = sbr.rel (%p211) target = $region20
      $region19: #{conv_pre_wav_block.4} parent=11 // pred_region
        _
      $region20: #{conv_pre_wav_block.4} parent=11 // pred_fallthru
        _
      // Predicated region
      $region21: #{conv_pre_wav_block.4} parent=11 // pred_check
        %p214 = pneg %p116
      $region22: #{conv_pre_wav_block.4} parent=11 // pred_check_branch
        %216 = sbr.rel (%p214) target = $region24
      $region23: #{conv_pre_wav_block.4} parent=11 // pred_region
        _
      $region24: #{conv_pre_wav_block.4} parent=11 // pred_fallthru
        _
      // Predicated region
      $region25: #{conv_pre_wav_block.4} parent=11 // pred_check
        %p217 = pneg %p137
      $region26: #{conv_pre_wav_block.4} parent=11 // pred_check_branch
        %219 = sbr.rel (%p217) target = $region28
      $region27: #{conv_pre_wav_block.4} parent=11 // pred_region
        _
      $region28: #{conv_pre_wav_block.4} parent=11 // pred_fallthru
        _
    $region12: #{conv_pre_wav_block.4} parent=5 // pred_fallthru
      _
    %p220 = scmp.lt.s32.totalorder %s13, 2
    // Predicated region
    $region29: #{conv_pre_wav_block.4} parent=5 // pred_check
      %p221 = pneg %p220
    $region30: #{conv_pre_wav_block.4} parent=5 // pred_check_branch
      %223 = sbr.rel (%p221) target = $region32
    $region31: #{conv_pre_wav_block.4} parent=5 // pred_region
      // Predicated region
      $region33: #{conv_pre_wav_block.4} parent=31 // pred_check
        %p224 = pneg %p47
      $region34: #{conv_pre_wav_block.4} parent=31 // pred_check_branch
        %226 = sbr.rel (%p224) target = $region36
      $region35: #{conv_pre_wav_block.4} parent=31 // pred_region
        %s227 = sadd.s32 %s20, %s21
        %p228 = scmp.lt.s32.totalorder %s227, 1
        %s229 = scalar_select %p228, %s227, 1
        %s230 = smul.addr %s229, 3
        %s231 = smul.addr %s230, 8
        %s232 = scalar_lea.vmem %s0, %s231
        %s233 = sadd.s32 %s20, %s21
      $region36: #{conv_pre_wav_block.4} parent=31 // pred_fallthru
        _
    $region32: #{conv_pre_wav_block.4} parent=5 // pred_fallthru
      _
    %p234 = scmp.le.s32.totalorder 1, %s13
    %p235 = scmp.lt.s32.totalorder %s13, 3
    %p236 = pnand %p234, %p235
    %p237 = pneg %p236
    // Predicated region
    $region37: #{conv_pre_wav_block.4} parent=5 // pred_check
      _
    $region38: #{conv_pre_wav_block.4} parent=5 // pred_check_branch
      %239 = sbr.rel (%p236) target = $region40
    $region39: #{conv_pre_wav_block.4} parent=5 // pred_region
      %s240 = ssub.s32 %s13, 1
      %s241 = sadd.s32 %s22, %s23
      %p242 = scmp.lt.s32.totalorder %s241, 1
      %s243 = scalar_select %p242, %s241, 1
      %s244 = smul.addr %s243, 3
      %s245 = smul.addr %s244, 8
      %s246 = scalar_lea.vmem %s0, %s245
      %p247 = pneg %p53
      %p248 = pneg %p50
      %p249 = pneg %p74
      %p250 = pneg %p71
      %p251 = pneg %p95
      %p252 = pneg %p92
      %p253 = pneg %p116
      %p254 = pneg %p113
      %p255 = pneg %p137
      %p256 = pneg %p134
      %p257 = pneg %p165
      %p258 = pneg %p162
      %s259 = smul.u32 2, %s23
      %p260 = scmp.lt.s32.totalorder %s22, 1
      %s261 = scalar_select %p260, %s22, 1
      %p262 = scmp.lt.s32.totalorder %s259, 1
      %s263 = scalar_select %p262, %s259, 1
      %s264 = smul.addr %s261, 2
      %s265 = sadd.s32 %s263, %s264
      %s266 = smul.addr %s265, 8
      %s267 = scalar_lea.vmem %s5, %s266
      %p268 = pneg %p193
      %p269 = pneg %p190
      %s270 = sadd.s32 %s22, %s23
      %p271 = scmp.lt.s32.totalorder %s270, 1
      %s272 = scalar_select %p271, %s270, 1
      %s273 = smul.addr %s272, 2
      %s274 = scalar_lea.vmem %s6, %s273
      %s275 = sadd.s32 %s22, %s23
      %p276 = scmp.lt.s32.totalorder %s275, 1
      %s277 = scalar_select %p276, %s275, 1
      %s278 = smul.addr %s277, 3
      %s279 = smul.addr %s278, 8
      %s280 = scalar_lea.vmem %s0, %s279
      %s281 = sadd.s32 %s22, %s23
      %s282 = smul.u32 2, %s23
      %p283 = scmp.lt.s32.totalorder %s22, 1
      %s284 = scalar_select %p283, %s22, 1
      %p285 = scmp.lt.s32.totalorder %s282, 1
      %s286 = scalar_select %p285, %s282, 1
      %s287 = smul.addr %s284, 2
      %s288 = sadd.s32 %s286, %s287
      %s289 = smul.addr %s288, 8
      %s290 = scalar_lea.vmem %s5, %s289
      %s291 = smul.u32 2, %s23
      %s292 = sadd.s32 %s22, %s23
      %p293 = scmp.lt.s32.totalorder %s292, 1
      %s294 = scalar_select %p293, %s292, 1
      %s295 = smul.addr %s294, 2
      %s296 = scalar_lea.vmem %s6, %s295
      %s297 = sadd.s32 %s22, %s23
      %s298 = smul.u32 %s23, 16
      %v299 = vld [vmem:[%s280] sm:$0xff]
      %v300 = vld [vmem:[%s280 + $0x8] sm:$0xff]
      %v301 = vld [vmem:[%s280 + $0x10] sm:$0x3f]
      %v302 = vld [vmem:[%s1] sm:$0xf]
      %s303 = scalar_lea.vmem %s1, 4
      %v304 = vld [vmem:[%s303] sm:$0xf]
      %vm308 = vcmask 1046528
      %v309 = vrot.slane %v299, 1
      %v310 = vrot.slane %v300, 1
      %v311 = vsel %vm308, %v309, %v310
      %v312 = vrot.slane %v301, 1
      %v313 = vsel %vm308, %v310, %v312
      %vm314 = vcmask 31744
      %v315 = vsel %vm314, %v311, 0
      %v317 = vsel %vm314, %v313, 0
      %v319 = vsel %vm314, %v312, 0
      %vm321 = vcmask 1043456
      %v323 = vsel %vm321, %v304, 0
      %325 = vmatprep.subr.mxu0 0.0
      %326 = vmatpush1.msra.mxu0 %v323
      %327 = vmatprep.subr.mxu0 0.0
      %328 = vmatpush1.msra.mxu0 0.0
      %329 = vmatprep.subr.mxu0 0.0
      %330 = vmatpush1.msra.mxu0 0.0
      %331 = vmatprep.subr.mxu0 0.0
      %332 = vmatpush1.msra.mxu0 0.0
      %333 = vmatprep.subr.mxu0 0.0
      %334 = vmatpush1.msra.mxu0 0.0
      %335 = vmatprep.subr.mxu0 0.0
      %336 = vmatpush1.msra.mxu0 0.0
      %337 = vmatprep.subr.mxu0 0.0
      %338 = vmatpush1.msra.mxu0 0.0
      %339 = vmatprep.subr.mxu0 0.0
      %340 = vmatpush1.msra.mxu0 0.0
      %341 = vmatprep.subr.mxu0 0.0
      %342 = vmatpush1.msra.mxu0 0.0
      %343 = vmatprep.subr.mxu0 0.0
      %344 = vmatpush1.msra.mxu0 0.0
      %345 = vmatprep.subr.mxu0 0.0
      %346 = vmatpush1.msra.mxu0 0.0
      %347 = vmatprep.subr.mxu0 0.0
      %348 = vmatpush1.msra.mxu0 0.0
      %349 = vmatprep.subr.mxu0 0.0
      %350 = vmatpush1.msra.mxu0 0.0
      %351 = vmatprep.subr.mxu0 0.0
      %352 = vmatpush1.msra.mxu0 0.0
      %353 = vmatprep.subr.mxu0 0.0
      %354 = vmatpush1.msra.mxu0 0.0
      %355 = vmatprep.subr.mxu0 0.0
      %356 = vmatpush1.msra.mxu0 0.0
      %357 = vmatprep.subr.mxu0 0.0
      %358 = vmatpush1.msra.mxu0 0.0
      %359 = vmatprep.subr.mxu0 0.0
      %360 = vmatpush1.msra.mxu0 0.0
      %361 = vmatprep.subr.mxu0 0.0
      %362 = vmatpush1.msra.mxu0 0.0
      %363 = vmatprep.subr.mxu0 0.0
      %364 = vmatpush1.msra.mxu0 0.0
      %365 = vmatprep.subr.mxu0 0.0
      %366 = vmatpush1.msra.mxu0 0.0
      %367 = vmatprep.subr.mxu0 0.0
      %368 = vmatpush1.msra.mxu0 0.0
      %369 = vmatprep.subr.mxu0 0.0
      %370 = vmatpush1.msra.mxu0 0.0
      %371 = vmatprep.subr.mxu0 0.0
      %372 = vmatpush1.msra.mxu0 0.0
      %373 = vmatprep.subr.mxu0 0.0
      %374 = vmatpush1.msra.mxu0 0.0
      %375 = vmatprep.subr.mxu0 0.0
      %376 = vmatpush1.msra.mxu0 0.0
      %377 = vmatprep.subr.mxu0 0.0
      %378 = vmatpush1.msra.mxu0 0.0
      %379 = vmatprep.subr.mxu0 0.0
      %380 = vmatpush1.msra.mxu0 0.0
      %381 = vmatprep.subr.mxu0 0.0
      %382 = vmatpush1.msra.mxu0 0.0
      %383 = vmatprep.subr.mxu0 0.0
      %384 = vmatpush1.msra.mxu0 0.0
      %385 = vmatprep.subr.mxu0 0.0
      %386 = vmatpush1.msra.mxu0 0.0
      %387 = vmatprep.subr.mxu0 0.0
      %388 = vmatpush1.msra.mxu0 0.0
      %389 = vmatprep.mubr.f32.mxu0 0.0
      %390 = vmatmul.mubr.f32.gmra.mrb[0].mxu0 %v315
      %v391 = vpop.f32.mrb[0].mxu0
      %v392 = vadd.f32 0.0, %v391
      %v393 = vpop.f32.mrb[0].mxu0
      %394 = vmatprep.mubr.f32.mxu0 0.0
      %395 = vmatmul.mubr.f32.gmra.mrb[0].mxu0 %v317
      %v396 = vpop.f32.mrb[0].mxu0
      %v397 = vadd.f32 0.0, %v396
      %v398 = vpop.f32.mrb[0].mxu0
      %399 = vmatprep.mubr.f32.mxu0 0.0
      %400 = vmatmul.mubr.f32.gmra.mrb[0].mxu0 %v319
      %v401 = vpop.f32.mrb[0].mxu0
      %v402 = vadd.f32 0.0, %v401
      %v403 = vpop.f32.mrb[0].mxu0
      %404 = vdwg.mxu0
      %v405 = vsel %vm314, %v299, 0
      %v407 = vsel %vm314, %v300, 0
      %v409 = vsel %vm314, %v301, 0
      %v412 = vsel %vm321, %v302, 0
      %414 = vmatprep.subr.mxu0 0.0
      %415 = vmatpush1.msra.mxu0 %v412
      %416 = vmatprep.subr.mxu0 0.0
      %417 = vmatpush1.msra.mxu0 0.0
      %418 = vmatprep.subr.mxu0 0.0
      %419 = vmatpush1.msra.mxu0 0.0
      %420 = vmatprep.subr.mxu0 0.0
      %421 = vmatpush1.msra.mxu0 0.0
      %422 = vmatprep.subr.mxu0 0.0
      %423 = vmatpush1.msra.mxu0 0.0
      %424 = vmatprep.subr.mxu0 0.0
      %425 = vmatpush1.msra.mxu0 0.0
      %426 = vmatprep.subr.mxu0 0.0
      %427 = vmatpush1.msra.mxu0 0.0
      %428 = vmatprep.subr.mxu0 0.0
      %429 = vmatpush1.msra.mxu0 0.0
      %430 = vmatprep.subr.mxu0 0.0
      %431 = vmatpush1.msra.mxu0 0.0
      %432 = vmatprep.subr.mxu0 0.0
      %433 = vmatpush1.msra.mxu0 0.0
      %434 = vmatprep.subr.mxu0 0.0
      %435 = vmatpush1.msra.mxu0 0.0
      %436 = vmatprep.subr.mxu0 0.0
      %437 = vmatpush1.msra.mxu0 0.0
      %438 = vmatprep.subr.mxu0 0.0
      %439 = vmatpush1.msra.mxu0 0.0
      %440 = vmatprep.subr.mxu0 0.0
      %441 = vmatpush1.msra.mxu0 0.0
      %442 = vmatprep.subr.mxu0 0.0
      %443 = vmatpush1.msra.mxu0 0.0
      %444 = vmatprep.subr.mxu0 0.0
      %445 = vmatpush1.msra.mxu0 0.0
      %446 = vmatprep.subr.mxu0 0.0
      %447 = vmatpush1.msra.mxu0 0.0
      %448 = vmatprep.subr.mxu0 0.0
      %449 = vmatpush1.msra.mxu0 0.0
      %450 = vmatprep.subr.mxu0 0.0
      %451 = vmatpush1.msra.mxu0 0.0
      %452 = vmatprep.subr.mxu0 0.0
      %453 = vmatpush1.msra.mxu0 0.0
      %454 = vmatprep.subr.mxu0 0.0
      %455 = vmatpush1.msra.mxu0 0.0
      %456 = vmatprep.subr.mxu0 0.0
      %457 = vmatpush1.msra.mxu0 0.0
      %458 = vmatprep.subr.mxu0 0.0
      %459 = vmatpush1.msra.mxu0 0.0
      %460 = vmatprep.subr.mxu0 0.0
      %461 = vmatpush1.msra.mxu0 0.0
      %462 = vmatprep.subr.mxu0 0.0
      %463 = vmatpush1.msra.mxu0 0.0
      %464 = vmatprep.subr.mxu0 0.0
      %465 = vmatpush1.msra.mxu0 0.0
      %466 = vmatprep.subr.mxu0 0.0
      %467 = vmatpush1.msra.mxu0 0.0
      %468 = vmatprep.subr.mxu0 0.0
      %469 = vmatpush1.msra.mxu0 0.0
      %470 = vmatprep.subr.mxu0 0.0
      %471 = vmatpush1.msra.mxu0 0.0
      %472 = vmatprep.subr.mxu0 0.0
      %473 = vmatpush1.msra.mxu0 0.0
      %474 = vmatprep.subr.mxu0 0.0
      %475 = vmatpush1.msra.mxu0 0.0
      %476 = vmatprep.subr.mxu0 0.0
      %477 = vmatpush1.msra.mxu0 0.0
      %478 = vmatprep.mubr.f32.mxu0 0.0
      %479 = vmatmul.mubr.f32.gmra.mrb[0].mxu0 %v405
      %v480 = vpop.f32.mrb[0].mxu0
      %v481 = vadd.f32 %v392, %v480
      %v482 = vpop.f32.mrb[0].mxu0
      %483 = vmatprep.mubr.f32.mxu0 0.0
      %484 = vmatmul.mubr.f32.gmra.mrb[0].mxu0 %v407
      %v485 = vpop.f32.mrb[0].mxu0
      %v486 = vadd.f32 %v397, %v485
      %v487 = vpop.f32.mrb[0].mxu0
      %488 = vmatprep.mubr.f32.mxu0 0.0
      %489 = vmatmul.mubr.f32.gmra.mrb[0].mxu0 %v409
      %v490 = vpop.f32.mrb[0].mxu0
      %v491 = vadd.f32 %v402, %v490
      %v492 = vpop.f32.mrb[0].mxu0
      %493 = vdwg.mxu0
      %s494 = scalar_lea.vmem %s1, 8
      %v495 = vld [vmem:[%s494] sm:$0xf]
      %vm496 = vcmask 1045504
      %v497 = vrot.slane %v299, 2
      %v498 = vrot.slane %v300, 2
      %v499 = vsel %vm496, %v497, %v498
      %v500 = vrot.slane %v301, 2
      %v501 = vsel %vm496, %v498, %v500
      %v502 = vsel %vm314, %v499, 0
      %v504 = vsel %vm314, %v501, 0
      %v506 = vsel %vm314, %v500, 0
      %v509 = vsel %vm321, %v495, 0
      %511 = vmatprep.subr.mxu0 0.0
      %512 = vmatpush1.msra.mxu0 %v509
      %513 = vmatprep.subr.mxu0 0.0
      %514 = vmatpush1.msra.mxu0 0.0
      %515 = vmatprep.subr.mxu0 0.0
      %516 = vmatpush1.msra.mxu0 0.0
      %517 = vmatprep.subr.mxu0 0.0
      %518 = vmatpush1.msra.mxu0 0.0
      %519 = vmatprep.subr.mxu0 0.0
      %520 = vmatpush1.msra.mxu0 0.0
      %521 = vmatprep.subr.mxu0 0.0
      %522 = vmatpush1.msra.mxu0 0.0
      %523 = vmatprep.subr.mxu0 0.0
      %524 = vmatpush1.msra.mxu0 0.0
      %525 = vmatprep.subr.mxu0 0.0
      %526 = vmatpush1.msra.mxu0 0.0
      %527 = vmatprep.subr.mxu0 0.0
      %528 = vmatpush1.msra.mxu0 0.0
      %529 = vmatprep.subr.mxu0 0.0
      %530 = vmatpush1.msra.mxu0 0.0
      %531 = vmatprep.subr.mxu0 0.0
      %532 = vmatpush1.msra.mxu0 0.0
      %533 = vmatprep.subr.mxu0 0.0
      %534 = vmatpush1.msra.mxu0 0.0
      %535 = vmatprep.subr.mxu0 0.0
      %536 = vmatpush1.msra.mxu0 0.0
      %537 = vmatprep.subr.mxu0 0.0
      %538 = vmatpush1.msra.mxu0 0.0
      %539 = vmatprep.subr.mxu0 0.0
      %540 = vmatpush1.msra.mxu0 0.0
      %541 = vmatprep.subr.mxu0 0.0
      %542 = vmatpush1.msra.mxu0 0.0
      %543 = vmatprep.subr.mxu0 0.0
      %544 = vmatpush1.msra.mxu0 0.0
      %545 = vmatprep.subr.mxu0 0.0
      %546 = vmatpush1.msra.mxu0 0.0
      %547 = vmatprep.subr.mxu0 0.0
      %548 = vmatpush1.msra.mxu0 0.0
      %549 = vmatprep.subr.mxu0 0.0
      %550 = vmatpush1.msra.mxu0 0.0
      %551 = vmatprep.subr.mxu0 0.0
      %552 = vmatpush1.msra.mxu0 0.0
      %553 = vmatprep.subr.mxu0 0.0
      %554 = vmatpush1.msra.mxu0 0.0
      %555 = vmatprep.subr.mxu0 0.0
      %556 = vmatpush1.msra.mxu0 0.0
      %557 = vmatprep.subr.mxu0 0.0
      %558 = vmatpush1.msra.mxu0 0.0
      %559 = vmatprep.subr.mxu0 0.0
      %560 = vmatpush1.msra.mxu0 0.0
      %561 = vmatprep.subr.mxu0 0.0
      %562 = vmatpush1.msra.mxu0 0.0
      %563 = vmatprep.subr.mxu0 0.0
      %564 = vmatpush1.msra.mxu0 0.0
      %565 = vmatprep.subr.mxu0 0.0
      %566 = vmatpush1.msra.mxu0 0.0
      %567 = vmatprep.subr.mxu0 0.0
      %568 = vmatpush1.msra.mxu0 0.0
      %569 = vmatprep.subr.mxu0 0.0
      %570 = vmatpush1.msra.mxu0 0.0
      %571 = vmatprep.subr.mxu0 0.0
      %572 = vmatpush1.msra.mxu0 0.0
      %573 = vmatprep.subr.mxu0 0.0
      %574 = vmatpush1.msra.mxu0 0.0
      %575 = vmatprep.mubr.f32.mxu0 0.0
      %576 = vmatmul.mubr.f32.gmra.mrb[0].mxu0 %v502
      %v577 = vpop.f32.mrb[0].mxu0
      %v578 = vadd.f32 0.0, %v577
      %v579 = vpop.f32.mrb[0].mxu0
      %580 = vmatprep.mubr.f32.mxu0 0.0
      %581 = vmatmul.mubr.f32.gmra.mrb[0].mxu0 %v504
      %v582 = vpop.f32.mrb[0].mxu0
      %v583 = vadd.f32 0.0, %v582
      %v584 = vpop.f32.mrb[0].mxu0
      %585 = vmatprep.mubr.f32.mxu0 0.0
      %586 = vmatmul.mubr.f32.gmra.mrb[0].mxu0 %v506
      %v587 = vpop.f32.mrb[0].mxu0
      %v588 = vadd.f32 0.0, %v587
      %v589 = vpop.f32.mrb[0].mxu0
      %590 = vdwg.mxu0
      %v591 = vadd.f32 %v481, %v578
      %v592 = vadd.f32 %v486, %v583
      %v593 = vadd.f32 %v491, %v588
      %v594 = vlaneseq
      %v595 = vshrl.u32 %v594, 7
      %v596 = vadd.s32 %v595, 8
      %v597 = vadd.s32 %v595, 16
      %s598 = ssub.s32 %s298, 2
      %v599 = vstv %s598
      %v600 = vadd.s32 %v595, %v599
      %v601 = vadd.s32 %v596, %v599
      %v602 = vadd.s32 %v597, %v599
      %vm603 = vcmp.ge.s32.totalorder %v600, 0
      %vm604 = vcmp.ge.s32.totalorder %v601, 0
      %vm605 = vcmp.ge.s32.totalorder %v602, 0
      %vm606 = vcmp.lt.s32.totalorder %v600, 16
      %vm607 = vcmp.lt.s32.totalorder %v601, 16
      %vm608 = vcmp.lt.s32.totalorder %v602, 16
      %vm609 = vmand %vm603, %vm606
      %vm610 = vmand %vm604, %vm607
      %vm611 = vmand %vm605, %vm608
      %v612 = vld [vmem:[%s3] sm:$0x1]
      %v614 = vlaneseq
      %v615 = vshrl.u32 %v614, 7
      %v616 = vsub.s32 0, %v615
      %v617 = vrot.slane %v612, %v616
      %v619 = vmul.f32 %v591, %v617
      %v620 = vmul.f32 %v592, %v617
      %v621 = vmul.f32 %v593, %v617
      %v622 = vld [vmem:[%s4] sm:$0x1]
      %v624 = vlaneseq
      %v625 = vshrl.u32 %v624, 7
      %v626 = vsub.s32 0, %v625
      %v627 = vrot.slane %v622, %v626
      %v629 = vadd.f32 %v619, %v627
      %v630 = vadd.f32 %v620, %v627
      %v631 = vadd.f32 %v621, %v627
      %v632 = vmax.f32 %v629, 0.0
      %v633 = vmax.f32 %v630, 0.0
      %v634 = vmax.f32 %v631, 0.0
      %v635 = vsel %vm609, 1, 0
      %v636 = vsel %vm610, 1, 0
      %v637 = vsel %vm611, 1, 0
      %vm638 = vcmp.eq.s32.totalorder %v635, 1
      %vm639 = vcmp.eq.s32.totalorder %v636, 1
      %vm640 = vcmp.eq.s32.totalorder %v637, 1
      %v641 = vsel %vm638, %v632, 0.0
      %v642 = vsel %vm639, %v633, 0.0
      %v643 = vsel %vm640, %v634, 0.0
      %v644 = vld [vmem:[%s2] sm:$0xff]
      %s645 = scalar_lea.vmem %s2, 8
      %v646 = vld [vmem:[%s645] sm:$0xff]
      %v650 = vrot.slane %v641, 2
      %v651 = vrot.slane %v642, 2
      %v652 = vsel %vm496, %v650, %v651
      %v653 = vrot.slane %v643, 2
      %v654 = vsel %vm496, %v651, %v653
      %vm655 = vcmask 64512
      %v656 = vsel %vm655, %v652, 0
      %v658 = vsel %vm655, %v654, 0
      %660 = vmatprep.subr.mxu0 0.0
      %661 = vmatpush1.msra.mxu0 %v646
      %662 = vmatprep.subr.mxu0 0.0
      %663 = vmatpush1.msra.mxu0 0.0
      %664 = vmatprep.subr.mxu0 0.0
      %665 = vmatpush1.msra.mxu0 0.0
      %666 = vmatprep.subr.mxu0 0.0
      %667 = vmatpush1.msra.mxu0 0.0
      %668 = vmatprep.subr.mxu0 0.0
      %669 = vmatpush1.msra.mxu0 0.0
      %670 = vmatprep.subr.mxu0 0.0
      %671 = vmatpush1.msra.mxu0 0.0
      %672 = vmatprep.subr.mxu0 0.0
      %673 = vmatpush1.msra.mxu0 0.0
      %674 = vmatprep.subr.mxu0 0.0
      %675 = vmatpush1.msra.mxu0 0.0
      %676 = vmatprep.subr.mxu0 0.0
      %677 = vmatpush1.msra.mxu0 0.0
      %678 = vmatprep.subr.mxu0 0.0
      %679 = vmatpush1.msra.mxu0 0.0
      %680 = vmatprep.subr.mxu0 0.0
      %681 = vmatpush1.msra.mxu0 0.0
      %682 = vmatprep.subr.mxu0 0.0
      %683 = vmatpush1.msra.mxu0 0.0
      %684 = vmatprep.subr.mxu0 0.0
      %685 = vmatpush1.msra.mxu0 0.0
      %686 = vmatprep.subr.mxu0 0.0
      %687 = vmatpush1.msra.mxu0 0.0
      %688 = vmatprep.subr.mxu0 0.0
      %689 = vmatpush1.msra.mxu0 0.0
      %690 = vmatprep.subr.mxu0 0.0
      %691 = vmatpush1.msra.mxu0 0.0
      %692 = vmatprep.subr.mxu0 0.0
      %693 = vmatpush1.msra.mxu0 0.0
      %694 = vmatprep.subr.mxu0 0.0
      %695 = vmatpush1.msra.mxu0 0.0
      %696 = vmatprep.subr.mxu0 0.0
      %697 = vmatpush1.msra.mxu0 0.0
      %698 = vmatprep.subr.mxu0 0.0
      %699 = vmatpush1.msra.mxu0 0.0
      %700 = vmatprep.subr.mxu0 0.0
      %701 = vmatpush1.msra.mxu0 0.0
      %702 = vmatprep.subr.mxu0 0.0
      %703 = vmatpush1.msra.mxu0 0.0
      %704 = vmatprep.subr.mxu0 0.0
      %705 = vmatpush1.msra.mxu0 0.0
      %706 = vmatprep.subr.mxu0 0.0
      %707 = vmatpush1.msra.mxu0 0.0
      %708 = vmatprep.subr.mxu0 0.0
      %709 = vmatpush1.msra.mxu0 0.0
      %710 = vmatprep.subr.mxu0 0.0
      %711 = vmatpush1.msra.mxu0 0.0
      %712 = vmatprep.subr.mxu0 0.0
      %713 = vmatpush1.msra.mxu0 0.0
      %714 = vmatprep.subr.mxu0 0.0
      %715 = vmatpush1.msra.mxu0 0.0
      %716 = vmatprep.subr.mxu0 0.0
      %717 = vmatpush1.msra.mxu0 0.0
      %718 = vmatprep.subr.mxu0 0.0
      %719 = vmatpush1.msra.mxu0 0.0
      %720 = vmatprep.subr.mxu0 0.0
      %721 = vmatpush1.msra.mxu0 0.0
      %722 = vmatprep.subr.mxu0 0.0
      %723 = vmatpush1.msra.mxu0 0.0
      %724 = vmatprep.mubr.f32.mxu0 0.0
      %725 = vmatmul.mubr.f32.gmra.mrb[0].mxu0 %v656
      %v726 = vpop.f32.mrb[0].mxu0
      %v727 = vadd.f32 0.0, %v726
      %v728 = vpop.f32.mrb[0].mxu0
      %729 = vmatprep.mubr.f32.mxu0 0.0
      %730 = vmatmul.mubr.f32.gmra.mrb[0].mxu0 %v658
      %v731 = vpop.f32.mrb[0].mxu0
      %v732 = vadd.f32 0.0, %v731
      %v733 = vpop.f32.mrb[0].mxu0
      %734 = vdwg.mxu0
      %v735 = vsel %vm655, %v641, 0
      %v737 = vsel %vm655, %v642, 0
      %739 = vmatprep.subr.mxu0 0.0
      %740 = vmatpush1.msra.mxu0 %v644
      %741 = vmatprep.subr.mxu0 0.0
      %742 = vmatpush1.msra.mxu0 0.0
      %743 = vmatprep.subr.mxu0 0.0
      %744 = vmatpush1.msra.mxu0 0.0
      %745 = vmatprep.subr.mxu0 0.0
      %746 = vmatpush1.msra.mxu0 0.0
      %747 = vmatprep.subr.mxu0 0.0
      %748 = vmatpush1.msra.mxu0 0.0
      %749 = vmatprep.subr.mxu0 0.0
      %750 = vmatpush1.msra.mxu0 0.0
      %751 = vmatprep.subr.mxu0 0.0
      %752 = vmatpush1.msra.mxu0 0.0
      %753 = vmatprep.subr.mxu0 0.0
      %754 = vmatpush1.msra.mxu0 0.0
      %755 = vmatprep.subr.mxu0 0.0
      %756 = vmatpush1.msra.mxu0 0.0
      %757 = vmatprep.subr.mxu0 0.0
      %758 = vmatpush1.msra.mxu0 0.0
      %759 = vmatprep.subr.mxu0 0.0
      %760 = vmatpush1.msra.mxu0 0.0
      %761 = vmatprep.subr.mxu0 0.0
      %762 = vmatpush1.msra.mxu0 0.0
      %763 = vmatprep.subr.mxu0 0.0
      %764 = vmatpush1.msra.mxu0 0.0
      %765 = vmatprep.subr.mxu0 0.0
      %766 = vmatpush1.msra.mxu0 0.0
      %767 = vmatprep.subr.mxu0 0.0
      %768 = vmatpush1.msra.mxu0 0.0
      %769 = vmatprep.subr.mxu0 0.0
      %770 = vmatpush1.msra.mxu0 0.0
      %771 = vmatprep.subr.mxu0 0.0
      %772 = vmatpush1.msra.mxu0 0.0
      %773 = vmatprep.subr.mxu0 0.0
      %774 = vmatpush1.msra.mxu0 0.0
      %775 = vmatprep.subr.mxu0 0.0
      %776 = vmatpush1.msra.mxu0 0.0
      %777 = vmatprep.subr.mxu0 0.0
      %778 = vmatpush1.msra.mxu0 0.0
      %779 = vmatprep.subr.mxu0 0.0
      %780 = vmatpush1.msra.mxu0 0.0
      %781 = vmatprep.subr.mxu0 0.0
      %782 = vmatpush1.msra.mxu0 0.0
      %783 = vmatprep.subr.mxu0 0.0
      %784 = vmatpush1.msra.mxu0 0.0
      %785 = vmatprep.subr.mxu0 0.0
      %786 = vmatpush1.msra.mxu0 0.0
      %787 = vmatprep.subr.mxu0 0.0
      %788 = vmatpush1.msra.mxu0 0.0
      %789 = vmatprep.subr.mxu0 0.0
      %790 = vmatpush1.msra.mxu0 0.0
      %791 = vmatprep.subr.mxu0 0.0
      %792 = vmatpush1.msra.mxu0 0.0
      %793 = vmatprep.subr.mxu0 0.0
      %794 = vmatpush1.msra.mxu0 0.0
      %795 = vmatprep.subr.mxu0 0.0
      %796 = vmatpush1.msra.mxu0 0.0
      %797 = vmatprep.subr.mxu0 0.0
      %798 = vmatpush1.msra.mxu0 0.0
      %799 = vmatprep.subr.mxu0 0.0
      %800 = vmatpush1.msra.mxu0 0.0
      %801 = vmatprep.subr.mxu0 0.0
      %802 = vmatpush1.msra.mxu0 0.0
      %803 = vmatprep.mubr.f32.mxu0 0.0
      %804 = vmatmul.mubr.f32.gmra.mrb[0].mxu0 %v735
      %v805 = vpop.f32.mrb[0].mxu0
      %v806 = vadd.f32 %v727, %v805
      %v807 = vpop.f32.mrb[0].mxu0
      %808 = vmatprep.mubr.f32.mxu0 0.0
      %809 = vmatmul.mubr.f32.gmra.mrb[0].mxu0 %v737
      %v810 = vpop.f32.mrb[0].mxu0
      %v811 = vadd.f32 %v732, %v810
      %v812 = vpop.f32.mrb[0].mxu0
      %813 = vdwg.mxu0
      %s814 = scalar_lea.vmem %s2, 16
      %v815 = vld [vmem:[%s814] sm:$0xff]
      %v816 = vrot.slane %v641, 4
      %v817 = vrot.slane %v642, 4
      %v818 = vsel %vm321, %v816, %v817
      %v819 = vrot.slane %v643, 4
      %v820 = vsel %vm321, %v817, %v819
      %v821 = vsel %vm655, %v818, 0
      %v823 = vsel %vm655, %v820, 0
      %825 = vmatprep.subr.mxu0 0.0
      %826 = vmatpush1.msra.mxu0 %v815
      %827 = vmatprep.subr.mxu0 0.0
      %828 = vmatpush1.msra.mxu0 0.0
      %829 = vmatprep.subr.mxu0 0.0
      %830 = vmatpush1.msra.mxu0 0.0
      %831 = vmatprep.subr.mxu0 0.0
      %832 = vmatpush1.msra.mxu0 0.0
      %833 = vmatprep.subr.mxu0 0.0
      %834 = vmatpush1.msra.mxu0 0.0
      %835 = vmatprep.subr.mxu0 0.0
      %836 = vmatpush1.msra.mxu0 0.0
      %837 = vmatprep.subr.mxu0 0.0
      %838 = vmatpush1.msra.mxu0 0.0
      %839 = vmatprep.subr.mxu0 0.0
      %840 = vmatpush1.msra.mxu0 0.0
      %841 = vmatprep.subr.mxu0 0.0
      %842 = vmatpush1.msra.mxu0 0.0
      %843 = vmatprep.subr.mxu0 0.0
      %844 = vmatpush1.msra.mxu0 0.0
      %845 = vmatprep.subr.mxu0 0.0
      %846 = vmatpush1.msra.mxu0 0.0
      %847 = vmatprep.subr.mxu0 0.0
      %848 = vmatpush1.msra.mxu0 0.0
      %849 = vmatprep.subr.mxu0 0.0
      %850 = vmatpush1.msra.mxu0 0.0
      %851 = vmatprep.subr.mxu0 0.0
      %852 = vmatpush1.msra.mxu0 0.0
      %853 = vmatprep.subr.mxu0 0.0
      %854 = vmatpush1.msra.mxu0 0.0
      %855 = vmatprep.subr.mxu0 0.0
      %856 = vmatpush1.msra.mxu0 0.0
      %857 = vmatprep.subr.mxu0 0.0
      %858 = vmatpush1.msra.mxu0 0.0
      %859 = vmatprep.subr.mxu0 0.0
      %860 = vmatpush1.msra.mxu0 0.0
      %861 = vmatprep.subr.mxu0 0.0
      %862 = vmatpush1.msra.mxu0 0.0
      %863 = vmatprep.subr.mxu0 0.0
      %864 = vmatpush1.msra.mxu0 0.0
      %865 = vmatprep.subr.mxu0 0.0
      %866 = vmatpush1.msra.mxu0 0.0
      %867 = vmatprep.subr.mxu0 0.0
      %868 = vmatpush1.msra.mxu0 0.0
      %869 = vmatprep.subr.mxu0 0.0
      %870 = vmatpush1.msra.mxu0 0.0
      %871 = vmatprep.subr.mxu0 0.0
      %872 = vmatpush1.msra.mxu0 0.0
      %873 = vmatprep.subr.mxu0 0.0
      %874 = vmatpush1.msra.mxu0 0.0
      %875 = vmatprep.subr.mxu0 0.0
      %876 = vmatpush1.msra.mxu0 0.0
      %877 = vmatprep.subr.mxu0 0.0
      %878 = vmatpush1.msra.mxu0 0.0
      %879 = vmatprep.subr.mxu0 0.0
      %880 = vmatpush1.msra.mxu0 0.0
      %881 = vmatprep.subr.mxu0 0.0
      %882 = vmatpush1.msra.mxu0 0.0
      %883 = vmatprep.subr.mxu0 0.0
      %884 = vmatpush1.msra.mxu0 0.0
      %885 = vmatprep.subr.mxu0 0.0
      %886 = vmatpush1.msra.mxu0 0.0
      %887 = vmatprep.subr.mxu0 0.0
      %888 = vmatpush1.msra.mxu0 0.0
      %889 = vmatprep.mubr.f32.mxu0 0.0
      %890 = vmatmul.mubr.f32.gmra.mrb[0].mxu0 %v821
      %v891 = vpop.f32.mrb[0].mxu0
      %v892 = vadd.f32 0.0, %v891
      %v893 = vpop.f32.mrb[0].mxu0
      %894 = vmatprep.mubr.f32.mxu0 0.0
      %895 = vmatmul.mubr.f32.gmra.mrb[0].mxu0 %v823
      %v896 = vpop.f32.mrb[0].mxu0
      %v897 = vadd.f32 0.0, %v896
      %v898 = vpop.f32.mrb[0].mxu0
      %899 = vdwg.mxu0
      %v900 = vadd.f32 %v806, %v892
      %v901 = vadd.f32 %v811, %v897
      %902 = vst.msk [vmem:[%s290] sm:$0xff] %vm655, %v900
      %903 = vst.msk [vmem:[%s290 + $0x8] sm:$0xff] %vm655, %v901
      %v904 = vstv %s298
      %v905 = vadd.s32 %v595, %v904
      %v906 = vadd.s32 %v596, %v904
      %vm907 = vcmp.lt.s32.totalorder %v905, 16
      %vm908 = vcmp.lt.s32.totalorder %v906, 16
      %v909 = vsel %vm907, 1, 0
      %v910 = vsel %vm908, 1, 0
      %vm911 = vcmp.eq.s32.totalorder %v909, 1
      %vm912 = vcmp.eq.s32.totalorder %v910, 1
      %v913 = vsel %vm911, %v900, 0.0
      %v914 = vsel %vm912, %v901, 0.0
      %v915 = vsel %vm655, %v913, 0.0
      %v916 = vsel %vm655, %v914, 0.0
      %v917 = vadd.f32 %v915, %v916
      %v918 = vrot.slane %v917, 4
      %v919 = vadd.f32 %v917, %v918
      %v920 = vrot.slane %v919, 2
      %v921 = vadd.f32 %v919, %v920
      %v922 = vrot.slane %v921, 1
      %v923 = vadd.f32 %v921, %v922
      %v924 = vmul.f32 %v913, %v913
      %v925 = vmul.f32 %v914, %v914
      %v926 = vsel %vm655, %v924, 0.0
      %v927 = vsel %vm655, %v925, 0.0
      %v928 = vadd.f32 %v926, %v927
      %v929 = vrot.slane %v928, 4
      %v930 = vadd.f32 %v928, %v929
      %v931 = vrot.slane %v930, 2
      %v932 = vadd.f32 %v930, %v931
      %v933 = vrot.slane %v932, 1
      %v934 = vadd.f32 %v932, %v933
      %vm935 = vcmask 1040384
      %v936 = vsel %vm935, %v923, %v934
      %vm937 = vcmask 58368
      %938 = vst.msk [vmem:[%s296] sm:$0x3] %vm937, %v936
      %s939 = smul.u32 2, %s23
      %p940 = scmp.lt.s32.totalorder %s22, 1
      %s941 = scalar_select %p940, %s22, 1
      %p942 = scmp.lt.s32.totalorder %s939, 1
      %s943 = scalar_select %p942, %s939, 1
      %s944 = smul.addr %s941, 2
      %s945 = sadd.s32 %s943, %s944
      %s946 = smul.addr %s945, 8
      %s947 = scalar_lea.vmem %s5, %s946
      %s948 = sadd.s32 %s22, %s23
      %p949 = scmp.lt.s32.totalorder %s948, 1
      %s950 = scalar_select %p949, %s948, 1
      %s951 = smul.addr %s950, 2
      %s952 = scalar_lea.vmem %s6, %s951
      // Predicated region
      $region41: #{conv_pre_wav_block.4} parent=39 // pred_check
        %p953 = pneg %p162
      $region42: #{conv_pre_wav_block.4} parent=39 // pred_check_branch
        %955 = sbr.rel (%p953) target = $region44
      $region43: #{conv_pre_wav_block.4} parent=39 // pred_region
        %s956 = smul.u32 2, %s23
      $region44: #{conv_pre_wav_block.4} parent=39 // pred_fallthru
        _
      // Predicated region
      $region45: #{conv_pre_wav_block.4} parent=39 // pred_check
        %p957 = pneg %p190
      $region46: #{conv_pre_wav_block.4} parent=39 // pred_check_branch
        %959 = sbr.rel (%p957) target = $region48
      $region47: #{conv_pre_wav_block.4} parent=39 // pred_region
        %s960 = sadd.s32 %s22, %s23
      $region48: #{conv_pre_wav_block.4} parent=39 // pred_fallthru
        _
    $region40: #{conv_pre_wav_block.4} parent=5 // pred_fallthru
      _
    %p961 = scmp.le.s32.totalorder 2, %s13
    // Predicated region
    $region49: #{conv_pre_wav_block.4} parent=5 // pred_check
      %p962 = pneg %p961
    $region50: #{conv_pre_wav_block.4} parent=5 // pred_check_branch
      %964 = sbr.rel (%p962) target = $region52
    $region51: #{conv_pre_wav_block.4} parent=5 // pred_region
      %s965 = ssub.s32 %s13, 2
      // Predicated region
      $region53: #{conv_pre_wav_block.4} parent=51 // pred_check
        %p966 = pneg %p168
      $region54: #{conv_pre_wav_block.4} parent=51 // pred_check_branch
        %968 = sbr.rel (%p966) target = $region56
      $region55: #{conv_pre_wav_block.4} parent=51 // pred_region
        %s969 = smul.u32 2, %s25
        %p970 = scmp.lt.s32.totalorder %s24, 1
        %s971 = scalar_select %p970, %s24, 1
        %p972 = scmp.lt.s32.totalorder %s969, 1
        %s973 = scalar_select %p972, %s969, 1
        %s974 = smul.addr %s971, 2
        %s975 = sadd.s32 %s973, %s974
        %s976 = smul.addr %s975, 8
        %s977 = scalar_lea.vmem %s5, %s976
      $region56: #{conv_pre_wav_block.4} parent=51 // pred_fallthru
        _
      // Predicated region
      $region57: #{conv_pre_wav_block.4} parent=51 // pred_check
        %p978 = pneg %p196
      $region58: #{conv_pre_wav_block.4} parent=51 // pred_check_branch
        %980 = sbr.rel (%p978) target = $region60
      $region59: #{conv_pre_wav_block.4} parent=51 // pred_region
        %s981 = sadd.s32 %s24, %s25
        %p982 = scmp.lt.s32.totalorder %s981, 1
        %s983 = scalar_select %p982, %s981, 1
        %s984 = smul.addr %s983, 2
        %s985 = scalar_lea.vmem %s6, %s984
      $region60: #{conv_pre_wav_block.4} parent=51 // pred_fallthru
        _
    $region52: #{conv_pre_wav_block.4} parent=5 // pred_fallthru
      _
  $region6: #{conv_pre_wav_block.4} parent=0 // loop_footer
    %s17 = sadd.s32 1, %s13
  $region7: #{conv_pre_wav_block.4} parent=0 // loop_footer_branch
    %12 = sbr.rel target = $region3
  $region8: #{conv_pre_wav_block.4} parent=0 // loop_exit
    _

</llo_original>
